<compile_context>
chip_gen: v6e
topology: v6e:2x2x1
jax: 0.10.0
libtpu: 0.0.40
codegen_flags: <defaults>
</compile_context>

<pallas_src>
import math
import jax
import jax.numpy as jnp
from jax.experimental import pallas as pl
from jax.experimental.pallas import tpu as pltpu

HIDDEN = 32      # logical hidden_size (PyTorch module used 256)
VOCAB = 64       # logical output_size
H_PAD = 128      # lane-dense padded hidden  (multiple of 128)
V_PAD = 128      # lane-dense padded vocab   (multiple of 128)
SEQ_LEN = 8      # number of decode steps fused into one kernel launch


def decoder_rnn_kernel(tok_ref,      # (T, 1)        int32 token ids (VMEM)
                       h0_ref,       # (1, HP)       initial hidden, f32
                       emb_ref,      # (VP, HP)      embedding table, bf16
                       wih_ref,      # (HP, 3*HP)    bf16, gate order [r | z | n]
                       whh_ref,      # (HP, 3*HP)    bf16
                       bias_ref,     # (1, 4*HP)     f32 [b_r+b'_r | b_z+b'_z | b_in | b_hn]
                       wout_ref,     # (HP, VP)      bf16
                       bout_ref,     # (1, VP)       f32
                       logp_ref,     # out (T, VP)   f32
                       hout_ref):    # out (1, HP)   f32 final hidden
    T = tok_ref.shape[0]
    HP = h0_ref.shape[1]
    VE = emb_ref.shape[0]
    VP = wout_ref.shape[1]

    # ---- Embedding gather (all T rows at once) via one-hot MXU matmul + ReLU.
    tok = tok_ref[...]                                               # (T, 1) int32
    vocab_ids = jax.lax.broadcasted_iota(jnp.int32, (T, VE), 1)
    onehot = jnp.where(vocab_ids == tok, 1.0, 0.0).astype(jnp.bfloat16)   # (T, VE)
    x_rows = jnp.dot(onehot, emb_ref[...],
                     preferred_element_type=jnp.float32)             # (T, HP) exact gather
    x = jnp.maximum(x_rows, 0.0).astype(jnp.bfloat16)                # ReLU (padded lanes stay 0)

    # ---- Hoisted input projection: one wide matmul + one bias add.
    bias = bias_ref[...]                                             # (1, 4*HP)
    b_i = bias[:, :3 * HP]          # [b_ih_r + b_hh_r | b_ih_z + b_hh_z | b_in]
    b_hn = bias[:, 3 * HP:]         # (1, HP)
    gi = jnp.dot(x, wih_ref[...], preferred_element_type=jnp.float32) + b_i   # (T, 3*HP)

    whh = whh_ref[...]                                               # resident (HP, 3*HP) bf16

    # ---- Recurrence: hidden carried in vregs, short static loop (unrolled).
    h = h0_ref[...]                                                  # (1, HP) f32
    h_rows = []
    for t in range(T):
        gh = jnp.dot(h.astype(jnp.bfloat16), whh,
                     preferred_element_type=jnp.float32)             # (1, 3*HP)
        gi_t = gi[t:t + 1, :]                                        # static row slice
        rz = jax.nn.sigmoid(gi_t[:, :2 * HP] + gh[:, :2 * HP])
        r = rz[:, :HP]
        z = rz[:, HP:]
        n = jnp.tanh(gi_t[:, 2 * HP:] + r * (gh[:, 2 * HP:] + b_hn))
        h = (1.0 - z) * n + z * h                                    # padded lanes stay exactly 0
        h_rows.append(h)

    # ---- Batched epilogue: one output matmul + one masked log-softmax,
    #      one dense (T, VP) tile store.
    h_all = jnp.concatenate(h_rows, axis=0)                          # (T, HP) f32
    logits = jnp.dot(h_all.astype(jnp.bfloat16), wout_ref[...],
                     preferred_element_type=jnp.float32) + bout_ref[...]      # (T, VP)
    col = jax.lax.broadcasted_iota(jnp.int32, (T, VP), 1)
    logits = jnp.where(col < VOCAB, logits, -1e30)
    m = jnp.max(logits, axis=-1, keepdims=True)
    shifted = logits - m
    lse = jnp.log(jnp.sum(jnp.exp(shifted), axis=-1, keepdims=True))
    logp_ref[...] = shifted - lse
    hout_ref[...] = h


def decoder_rnn_forward_seq(tokens, hidden, packed):
    """tokens: int32 (T,); hidden: (1,1,H) f32.
    Returns (log_probs (T, V) f32, final hidden (1,1,H) f32)."""
    emb_p, wih_p, whh_p, bias_p, wout_p, bout_p = packed
    T = tokens.shape[0]
    HP, VP = H_PAD, V_PAD

    tok2d = tokens.reshape(T, 1).astype(jnp.int32)
    h0 = jnp.zeros((1, HP), jnp.float32).at[:, :HIDDEN].set(hidden.reshape(1, HIDDEN))

    logp_pad, h_pad = pl.pallas_call(
        decoder_rnn_kernel,
        grid=(1,),
        in_specs=[
            pl.BlockSpec((T, 1), lambda i: (0, 0)),            # token ids
            pl.BlockSpec((1, HP), lambda i: (0, 0)),           # h0
            pl.BlockSpec((V_PAD, HP), lambda i: (0, 0)),       # embedding table (resident)
            pl.BlockSpec((HP, 3 * HP), lambda i: (0, 0)),      # W_ih (resident)
            pl.BlockSpec((HP, 3 * HP), lambda i: (0, 0)),      # W_hh (resident)
            pl.BlockSpec((1, 4 * HP), lambda i: (0, 0)),       # fused biases
            pl.BlockSpec((HP, VP), lambda i: (0, 0)),          # W_out (resident)
            pl.BlockSpec((1, VP), lambda i: (0, 0)),           # b_out
        ],
        out_specs=[
            pl.BlockSpec((T, VP), lambda i: (0, 0)),           # all log-probs, one dense store
            pl.BlockSpec((1, HP), lambda i: (0, 0)),           # final hidden
        ],
        out_shape=(
            jax.ShapeDtypeStruct((T, VP), jnp.float32),
            jax.ShapeDtypeStruct((1, HP), jnp.float32),
        ),
        compiler_params=pltpu.CompilerParams(
            dimension_semantics=("arbitrary",),
            vmem_limit_bytes=32 * 1024 * 1024,
        ),
    )(tok2d, h0, emb_p, wih_p, whh_p, bias_p, wout_p, bout_p)

    return logp_pad[:, :VOCAB], h_pad[:, :HIDDEN].reshape(1, 1, HIDDEN)


def init_params(key, H, V):
    """PyTorch-convention parameters (same shapes as the nn.Module)."""
    ks = jax.random.split(key, 7)
    bound = 1.0 / math.sqrt(H)
    emb = jax.random.normal(ks[0], (V, H), jnp.float32)                         # nn.Embedding(V, H)
    w_ih = jax.random.uniform(ks[1], (3 * H, H), jnp.float32, -bound, bound)    # GRU weight_ih (r,z,n)
    w_hh = jax.random.uniform(ks[2], (3 * H, H), jnp.float32, -bound, bound)    # GRU weight_hh
    b_ih = jax.random.uniform(ks[3], (3 * H,), jnp.float32, -bound, bound)
    b_hh = jax.random.uniform(ks[4], (3 * H,), jnp.float32, -bound, bound)
    w_out = jax.random.uniform(ks[5], (V, H), jnp.float32, -bound, bound)       # nn.Linear(H, V)
    b_out = jax.random.uniform(ks[6], (V,), jnp.float32, -bound, bound)
    return emb, w_ih, w_hh, b_ih, b_hh, w_out, b_out


def pack_params(params):
    """Convert PyTorch-layout params to the kernel's padded/fused bf16 layout."""
    emb, w_ih, w_hh, b_ih, b_hh, w_out, b_out = params
    H, V, HP, VP = HIDDEN, VOCAB, H_PAD, V_PAD

    # Embedding table: (V, H) -> (V_PAD, HP) bf16, zero-padded rows/lanes.
    emb_p = jnp.zeros((VP, HP), jnp.bfloat16).at[:V, :H].set(emb.astype(jnp.bfloat16))

    # GRU weights: (3H, H) per-gate -> transposed and scattered into (HP, 3*HP),
    # gate g occupying lanes [g*HP, g*HP + H), rows [0, H); zeros elsewhere.
    def pack_w(w):
        out = jnp.zeros((HP, 3 * HP), jnp.bfloat16)
        for g in range(3):
            wg = w[g * H:(g + 1) * H, :].T.astype(jnp.bfloat16)    # (H, H), x @ wg
            out = out.at[:H, g * HP:g * HP + H].set(wg)
        return out

    wih_p = pack_w(w_ih)
    whh_p = pack_w(w_hh)

    # Biases fused into one lane-contiguous row:
    #   [ b_ih_r+b_hh_r | b_ih_z+b_hh_z | b_in | b_hn ]  (each slot HP wide)
    b_ih3 = b_ih.reshape(3, H)
    b_hh3 = b_hh.reshape(3, H)
    bias_p = jnp.zeros((1, 4 * HP), jnp.float32)
    bias_p = bias_p.at[0, 0:H].set(b_ih3[0] + b_hh3[0])                 # r
    bias_p = bias_p.at[0, HP:HP + H].set(b_ih3[1] + b_hh3[1])           # z
    bias_p = bias_p.at[0, 2 * HP:2 * HP + H].set(b_ih3[2])              # n (input)
    bias_p = bias_p.at[0, 3 * HP:3 * HP + H].set(b_hh3[2])              # n (hidden)

    # Output linear: (V, H) -> (HP, VP) bf16 (transposed, zero-padded), bias (1, VP).
    wout_p = jnp.zeros((HP, VP), jnp.bfloat16).at[:H, :V].set(w_out.T.astype(jnp.bfloat16))
    bout_p = jnp.zeros((1, VP), jnp.float32).at[0, :V].set(b_out)
    return emb_p, wih_p, whh_p, bias_p, wout_p, bout_p


def reference_forward_seq(tokens, hidden, params):
    """Pure-JAX reference of the PyTorch forward applied step-by-step
    (weights rounded to bf16 exactly as the kernel stores them)."""
    emb, w_ih, w_hh, b_ih, b_hh, w_out, b_out = params
    H = HIDDEN
    bf = lambda a: a.astype(jnp.bfloat16).astype(jnp.float32)
    emb_b, w_ih_b, w_hh_b, w_out_b = bf(emb), bf(w_ih), bf(w_hh), bf(w_out)

    h = hidden.reshape(1, H)
    outs = []
    for t in range(tokens.shape[0]):
        x = bf(jnp.maximum(emb_b[tokens[t]].reshape(1, H), 0.0))
        h_b = bf(h)
        gi = x @ w_ih_b.T + b_ih            # (1, 3H)
        gh = h_b @ w_hh_b.T + b_hh          # (1, 3H)
        i_r, i_z, i_n = jnp.split(gi, 3, axis=1)
        h_r, h_z, h_n = jnp.split(gh, 3, axis=1)
        r = jax.nn.sigmoid(i_r + h_r)
        z = jax.nn.sigmoid(i_z + h_z)
        n = jnp.tanh(i_n + r * h_n)
        h = (1.0 - z) * n + z * h
        logits = bf(h) @ w_out_b.T + b_out
        outs.append(jax.nn.log_softmax(logits, axis=1))
    return jnp.concatenate(outs, axis=0), h.reshape(1, 1, H)


if __name__ == "__main__":
    key = jax.random.PRNGKey(0)
    pkey, hkey, tkey = jax.random.split(key, 3)
    params = init_params(pkey, HIDDEN, VOCAB)
    packed = pack_params(params)

    tokens = jax.random.randint(tkey, (SEQ_LEN,), 0, VOCAB, dtype=jnp.int32)
    hidden0 = jax.random.normal(hkey, (1, 1, HIDDEN), jnp.float32)

    log_probs, h_final = decoder_rnn_forward_seq(tokens, hidden0, packed)
    jax.block_until_ready((log_probs, h_final))

    ref_lp, ref_h = reference_forward_seq(tokens, hidden0, params)
    assert log_probs.shape == (SEQ_LEN, VOCAB)
    assert h_final.shape == (1, 1, HIDDEN)
    assert jnp.allclose(log_probs, ref_lp, atol=2e-3, rtol=2e-3), "log_softmax mismatch"
    assert jnp.allclose(h_final, ref_h, atol=2e-3, rtol=2e-3), "hidden mismatch"

    print("KERNEL_OK")
</pallas_src>

<mosaic_0001>
module attributes {stable_mosaic.version = 11 : i64} {
  func.func @decoder_rnn_kernel(%arg0: i32, %arg1: memref<8x1xi32, #tpu.memory_space<vmem>>, %arg2: memref<1x128xf32, #tpu.memory_space<vmem>>, %arg3: memref<128x128xbf16, #tpu.memory_space<vmem>>, %arg4: memref<128x384xbf16, #tpu.memory_space<vmem>>, %arg5: memref<128x384xbf16, #tpu.memory_space<vmem>>, %arg6: memref<1x512xf32, #tpu.memory_space<vmem>>, %arg7: memref<128x128xbf16, #tpu.memory_space<vmem>>, %arg8: memref<1x128xf32, #tpu.memory_space<vmem>>, %arg9: memref<8x128xf32, #tpu.memory_space<vmem>>, %arg10: memref<1x128xf32, #tpu.memory_space<vmem>>) attributes {dimension_semantics = [#tpu.dimension_semantics<arbitrary>], iteration_bounds = array<i64: 1>, scalar_prefetch = 0 : i64, scratch_operands = 0 : i64, tpu.core_type = #tpu.core_type<tc>, window_params = [{pipeline_mode = #tpu.pipeline_mode<synchronous>, transform_indices = @transform_0, window_bounds = array<i64: 8, 1>}, {pipeline_mode = #tpu.pipeline_mode<synchronous>, transform_indices = @transform_1, window_bounds = array<i64: 1, 128>}, {pipeline_mode = #tpu.pipeline_mode<synchronous>, transform_indices = @transform_2, window_bounds = array<i64: 128, 128>}, {pipeline_mode = #tpu.pipeline_mode<synchronous>, transform_indices = @transform_3, window_bounds = array<i64: 128, 384>}, {pipeline_mode = #tpu.pipeline_mode<synchronous>, transform_indices = @transform_4, window_bounds = array<i64: 128, 384>}, {pipeline_mode = #tpu.pipeline_mode<synchronous>, transform_indices = @transform_5, window_bounds = array<i64: 1, 512>}, {pipeline_mode = #tpu.pipeline_mode<synchronous>, transform_indices = @transform_6, window_bounds = array<i64: 128, 128>}, {pipeline_mode = #tpu.pipeline_mode<synchronous>, transform_indices = @transform_7, window_bounds = array<i64: 1, 128>}, {pipeline_mode = #tpu.pipeline_mode<synchronous>, transform_indices = @transform_8, window_bounds = array<i64: 8, 128>}, {pipeline_mode = #tpu.pipeline_mode<synchronous>, transform_indices = @transform_9, window_bounds = array<i64: 1, 128>}]} {
    %c0 = arith.constant 0 : index
    %c0_0 = arith.constant 0 : index
    %0 = vector.load %arg1[%c0, %c0_0] : memref<8x1xi32, #tpu.memory_space<vmem>>, vector<8x1xi32>
    %1 = tpu.iota {dimensions = array<i32: 1>} : vector<8x128xi32>
    %2 = vector.broadcast %0 : vector<8x1xi32> to vector<8x128xi32>
    %3 = arith.cmpi eq, %1, %2 : vector<8x128xi32>
    %cst = arith.constant 1.000000e+00 : f32
    %cst_1 = arith.constant 0.000000e+00 : f32
    %4 = vector.broadcast %cst : f32 to vector<8x128xf32>
    %5 = vector.broadcast %cst_1 : f32 to vector<8x128xf32>
    %6 = arith.select %3, %4, %5 : vector<8x128xi1>, vector<8x128xf32>
    %7 = arith.truncf %6 : vector<8x128xf32> to vector<8x128xbf16>
    %c0_2 = arith.constant 0 : index
    %c0_3 = arith.constant 0 : index
    %8 = vector.load %arg3[%c0_2, %c0_3] : memref<128x128xbf16, #tpu.memory_space<vmem>>, vector<128x128xbf16>
    %cst_4 = arith.constant dense<0.000000e+00> : vector<8x128xf32>
    %9 = tpu.matmul %7, %8, %cst_4 {dimension_numbers = #tpu.dot_dimension_numbers<[1], [0], [0], [1], [0, 0, 1, 1], [], []>} : vector<8x128xbf16>, vector<128x128xbf16>, vector<8x128xf32> -> vector<8x128xf32>
    %cst_5 = arith.constant 0.000000e+00 : f32
    %10 = vector.broadcast %cst_5 : f32 to vector<8x128xf32>
    %11 = arith.maximumf %9, %10 : vector<8x128xf32>
    %12 = arith.truncf %11 : vector<8x128xf32> to vector<8x128xbf16>
    %c0_6 = arith.constant 0 : index
    %c0_7 = arith.constant 0 : index
    %13 = vector.load %arg6[%c0_6, %c0_7] : memref<1x512xf32, #tpu.memory_space<vmem>>, vector<1x512xf32>
    %14 = vector.extract_strided_slice %13 {offsets = [0, 0], sizes = [1, 384], strides = [1, 1]} : vector<1x512xf32> to vector<1x384xf32>
    %15 = vector.extract_strided_slice %13 {offsets = [0, 384], sizes = [1, 128], strides = [1, 1]} : vector<1x512xf32> to vector<1x128xf32>
    %c0_8 = arith.constant 0 : index
    %c0_9 = arith.constant 0 : index
    %16 = vector.load %arg4[%c0_8, %c0_9] : memref<128x384xbf16, #tpu.memory_space<vmem>>, vector<128x384xbf16>
    %cst_10 = arith.constant dense<0.000000e+00> : vector<8x384xf32>
    %17 = tpu.matmul %12, %16, %cst_10 {dimension_numbers = #tpu.dot_dimension_numbers<[1], [0], [0], [1], [0, 0, 1, 1], [], []>} : vector<8x128xbf16>, vector<128x384xbf16>, vector<8x384xf32> -> vector<8x384xf32>
    %18 = vector.broadcast %14 : vector<1x384xf32> to vector<8x384xf32>
    %19 = arith.addf %17, %18 : vector<8x384xf32>
    %c0_11 = arith.constant 0 : index
    %c0_12 = arith.constant 0 : index
    %20 = vector.load %arg5[%c0_11, %c0_12] : memref<128x384xbf16, #tpu.memory_space<vmem>>, vector<128x384xbf16>
    %c0_13 = arith.constant 0 : index
    %c0_14 = arith.constant 0 : index
    %21 = vector.load %arg2[%c0_13, %c0_14] : memref<1x128xf32, #tpu.memory_space<vmem>>, vector<1x128xf32>
    %22 = arith.truncf %21 : vector<1x128xf32> to vector<1x128xbf16>
    %cst_15 = arith.constant dense<0.000000e+00> : vector<1x384xf32>
    %23 = tpu.matmul %22, %20, %cst_15 {dimension_numbers = #tpu.dot_dimension_numbers<[1], [0], [0], [1], [0, 0, 1, 1], [], []>} : vector<1x128xbf16>, vector<128x384xbf16>, vector<1x384xf32> -> vector<1x384xf32>
    %24 = vector.extract_strided_slice %19 {offsets = [0, 0], sizes = [1, 384], strides = [1, 1]} : vector<8x384xf32> to vector<1x384xf32>
    %25 = vector.extract_strided_slice %24 {offsets = [0, 0], sizes = [1, 256], strides = [1, 1]} : vector<1x384xf32> to vector<1x256xf32>
    %26 = vector.extract_strided_slice %23 {offsets = [0, 0], sizes = [1, 256], strides = [1, 1]} : vector<1x384xf32> to vector<1x256xf32>
    %27 = arith.addf %25, %26 : vector<1x256xf32>
    %28 = arith.negf %27 : vector<1x256xf32>
    %29 = math.exp %28 : vector<1x256xf32>
    %cst_16 = arith.constant 1.000000e+00 : f32
    %30 = vector.broadcast %cst_16 : f32 to vector<1x256xf32>
    %31 = arith.addf %30, %29 : vector<1x256xf32>
    %32 = arith.divf %30, %31 : vector<1x256xf32>
    %33 = vector.extract_strided_slice %32 {offsets = [0, 0], sizes = [1, 128], strides = [1, 1]} : vector<1x256xf32> to vector<1x128xf32>
    %34 = vector.extract_strided_slice %32 {offsets = [0, 128], sizes = [1, 128], strides = [1, 1]} : vector<1x256xf32> to vector<1x128xf32>
    %35 = vector.extract_strided_slice %24 {offsets = [0, 256], sizes = [1, 128], strides = [1, 1]} : vector<1x384xf32> to vector<1x128xf32>
    %36 = vector.extract_strided_slice %23 {offsets = [0, 256], sizes = [1, 128], strides = [1, 1]} : vector<1x384xf32> to vector<1x128xf32>
    %37 = arith.addf %36, %15 : vector<1x128xf32>
    %38 = arith.mulf %33, %37 : vector<1x128xf32>
    %39 = arith.addf %35, %38 : vector<1x128xf32>
    %40 = math.tanh %39 : vector<1x128xf32>
    %cst_17 = arith.constant 1.000000e+00 : f32
    %41 = vector.broadcast %cst_17 : f32 to vector<1x128xf32>
    %42 = arith.subf %41, %34 : vector<1x128xf32>
    %43 = arith.mulf %42, %40 : vector<1x128xf32>
    %44 = arith.mulf %34, %21 : vector<1x128xf32>
    %45 = arith.addf %43, %44 : vector<1x128xf32>
    %46 = arith.truncf %45 : vector<1x128xf32> to vector<1x128xbf16>
    %cst_18 = arith.constant dense<0.000000e+00> : vector<1x384xf32>
    %47 = tpu.matmul %46, %20, %cst_18 {dimension_numbers = #tpu.dot_dimension_numbers<[1], [0], [0], [1], [0, 0, 1, 1], [], []>} : vector<1x128xbf16>, vector<128x384xbf16>, vector<1x384xf32> -> vector<1x384xf32>
    %48 = vector.extract_strided_slice %19 {offsets = [1, 0], sizes = [1, 384], strides = [1, 1]} : vector<8x384xf32> to vector<1x384xf32>
    %49 = vector.extract_strided_slice %48 {offsets = [0, 0], sizes = [1, 256], strides = [1, 1]} : vector<1x384xf32> to vector<1x256xf32>
    %50 = vector.extract_strided_slice %47 {offsets = [0, 0], sizes = [1, 256], strides = [1, 1]} : vector<1x384xf32> to vector<1x256xf32>
    %51 = arith.addf %49, %50 : vector<1x256xf32>
    %52 = arith.negf %51 : vector<1x256xf32>
    %53 = math.exp %52 : vector<1x256xf32>
    %cst_19 = arith.constant 1.000000e+00 : f32
    %54 = vector.broadcast %cst_19 : f32 to vector<1x256xf32>
    %55 = arith.addf %54, %53 : vector<1x256xf32>
    %56 = arith.divf %54, %55 : vector<1x256xf32>
    %57 = vector.extract_strided_slice %56 {offsets = [0, 0], sizes = [1, 128], strides = [1, 1]} : vector<1x256xf32> to vector<1x128xf32>
    %58 = vector.extract_strided_slice %56 {offsets = [0, 128], sizes = [1, 128], strides = [1, 1]} : vector<1x256xf32> to vector<1x128xf32>
    %59 = vector.extract_strided_slice %48 {offsets = [0, 256], sizes = [1, 128], strides = [1, 1]} : vector<1x384xf32> to vector<1x128xf32>
    %60 = vector.extract_strided_slice %47 {offsets = [0, 256], sizes = [1, 128], strides = [1, 1]} : vector<1x384xf32> to vector<1x128xf32>
    %61 = arith.addf %60, %15 : vector<1x128xf32>
    %62 = arith.mulf %57, %61 : vector<1x128xf32>
    %63 = arith.addf %59, %62 : vector<1x128xf32>
    %64 = math.tanh %63 : vector<1x128xf32>
    %cst_20 = arith.constant 1.000000e+00 : f32
    %65 = vector.broadcast %cst_20 : f32 to vector<1x128xf32>
    %66 = arith.subf %65, %58 : vector<1x128xf32>
    %67 = arith.mulf %66, %64 : vector<1x128xf32>
    %68 = arith.mulf %58, %45 : vector<1x128xf32>
    %69 = arith.addf %67, %68 : vector<1x128xf32>
    %70 = arith.truncf %69 : vector<1x128xf32> to vector<1x128xbf16>
    %cst_21 = arith.constant dense<0.000000e+00> : vector<1x384xf32>
    %71 = tpu.matmul %70, %20, %cst_21 {dimension_numbers = #tpu.dot_dimension_numbers<[1], [0], [0], [1], [0, 0, 1, 1], [], []>} : vector<1x128xbf16>, vector<128x384xbf16>, vector<1x384xf32> -> vector<1x384xf32>
    %72 = vector.extract_strided_slice %19 {offsets = [2, 0], sizes = [1, 384], strides = [1, 1]} : vector<8x384xf32> to vector<1x384xf32>
    %73 = vector.extract_strided_slice %72 {offsets = [0, 0], sizes = [1, 256], strides = [1, 1]} : vector<1x384xf32> to vector<1x256xf32>
    %74 = vector.extract_strided_slice %71 {offsets = [0, 0], sizes = [1, 256], strides = [1, 1]} : vector<1x384xf32> to vector<1x256xf32>
    %75 = arith.addf %73, %74 : vector<1x256xf32>
    %76 = arith.negf %75 : vector<1x256xf32>
    %77 = math.exp %76 : vector<1x256xf32>
    %cst_22 = arith.constant 1.000000e+00 : f32
    %78 = vector.broadcast %cst_22 : f32 to vector<1x256xf32>
    %79 = arith.addf %78, %77 : vector<1x256xf32>
    %80 = arith.divf %78, %79 : vector<1x256xf32>
    %81 = vector.extract_strided_slice %80 {offsets = [0, 0], sizes = [1, 128], strides = [1, 1]} : vector<1x256xf32> to vector<1x128xf32>
    %82 = vector.extract_strided_slice %80 {offsets = [0, 128], sizes = [1, 128], strides = [1, 1]} : vector<1x256xf32> to vector<1x128xf32>
    %83 = vector.extract_strided_slice %72 {offsets = [0, 256], sizes = [1, 128], strides = [1, 1]} : vector<1x384xf32> to vector<1x128xf32>
    %84 = vector.extract_strided_slice %71 {offsets = [0, 256], sizes = [1, 128], strides = [1, 1]} : vector<1x384xf32> to vector<1x128xf32>
    %85 = arith.addf %84, %15 : vector<1x128xf32>
    %86 = arith.mulf %81, %85 : vector<1x128xf32>
    %87 = arith.addf %83, %86 : vector<1x128xf32>
    %88 = math.tanh %87 : vector<1x128xf32>
    %cst_23 = arith.constant 1.000000e+00 : f32
    %89 = vector.broadcast %cst_23 : f32 to vector<1x128xf32>
    %90 = arith.subf %89, %82 : vector<1x128xf32>
    %91 = arith.mulf %90, %88 : vector<1x128xf32>
    %92 = arith.mulf %82, %69 : vector<1x128xf32>
    %93 = arith.addf %91, %92 : vector<1x128xf32>
    %94 = arith.truncf %93 : vector<1x128xf32> to vector<1x128xbf16>
    %cst_24 = arith.constant dense<0.000000e+00> : vector<1x384xf32>
    %95 = tpu.matmul %94, %20, %cst_24 {dimension_numbers = #tpu.dot_dimension_numbers<[1], [0], [0], [1], [0, 0, 1, 1], [], []>} : vector<1x128xbf16>, vector<128x384xbf16>, vector<1x384xf32> -> vector<1x384xf32>
    %96 = vector.extract_strided_slice %19 {offsets = [3, 0], sizes = [1, 384], strides = [1, 1]} : vector<8x384xf32> to vector<1x384xf32>
    %97 = vector.extract_strided_slice %96 {offsets = [0, 0], sizes = [1, 256], strides = [1, 1]} : vector<1x384xf32> to vector<1x256xf32>
    %98 = vector.extract_strided_slice %95 {offsets = [0, 0], sizes = [1, 256], strides = [1, 1]} : vector<1x384xf32> to vector<1x256xf32>
    %99 = arith.addf %97, %98 : vector<1x256xf32>
    %100 = arith.negf %99 : vector<1x256xf32>
    %101 = math.exp %100 : vector<1x256xf32>
    %cst_25 = arith.constant 1.000000e+00 : f32
    %102 = vector.broadcast %cst_25 : f32 to vector<1x256xf32>
    %103 = arith.addf %102, %101 : vector<1x256xf32>
    %104 = arith.divf %102, %103 : vector<1x256xf32>
    %105 = vector.extract_strided_slice %104 {offsets = [0, 0], sizes = [1, 128], strides = [1, 1]} : vector<1x256xf32> to vector<1x128xf32>
    %106 = vector.extract_strided_slice %104 {offsets = [0, 128], sizes = [1, 128], strides = [1, 1]} : vector<1x256xf32> to vector<1x128xf32>
    %107 = vector.extract_strided_slice %96 {offsets = [0, 256], sizes = [1, 128], strides = [1, 1]} : vector<1x384xf32> to vector<1x128xf32>
    %108 = vector.extract_strided_slice %95 {offsets = [0, 256], sizes = [1, 128], strides = [1, 1]} : vector<1x384xf32> to vector<1x128xf32>
    %109 = arith.addf %108, %15 : vector<1x128xf32>
    %110 = arith.mulf %105, %109 : vector<1x128xf32>
    %111 = arith.addf %107, %110 : vector<1x128xf32>
    %112 = math.tanh %111 : vector<1x128xf32>
    %cst_26 = arith.constant 1.000000e+00 : f32
    %113 = vector.broadcast %cst_26 : f32 to vector<1x128xf32>
    %114 = arith.subf %113, %106 : vector<1x128xf32>
    %115 = arith.mulf %114, %112 : vector<1x128xf32>
    %116 = arith.mulf %106, %93 : vector<1x128xf32>
    %117 = arith.addf %115, %116 : vector<1x128xf32>
    %118 = arith.truncf %117 : vector<1x128xf32> to vector<1x128xbf16>
    %cst_27 = arith.constant dense<0.000000e+00> : vector<1x384xf32>
    %119 = tpu.matmul %118, %20, %cst_27 {dimension_numbers = #tpu.dot_dimension_numbers<[1], [0], [0], [1], [0, 0, 1, 1], [], []>} : vector<1x128xbf16>, vector<128x384xbf16>, vector<1x384xf32> -> vector<1x384xf32>
    %120 = vector.extract_strided_slice %19 {offsets = [4, 0], sizes = [1, 384], strides = [1, 1]} : vector<8x384xf32> to vector<1x384xf32>
    %121 = vector.extract_strided_slice %120 {offsets = [0, 0], sizes = [1, 256], strides = [1, 1]} : vector<1x384xf32> to vector<1x256xf32>
    %122 = vector.extract_strided_slice %119 {offsets = [0, 0], sizes = [1, 256], strides = [1, 1]} : vector<1x384xf32> to vector<1x256xf32>
    %123 = arith.addf %121, %122 : vector<1x256xf32>
    %124 = arith.negf %123 : vector<1x256xf32>
    %125 = math.exp %124 : vector<1x256xf32>
    %cst_28 = arith.constant 1.000000e+00 : f32
    %126 = vector.broadcast %cst_28 : f32 to vector<1x256xf32>
    %127 = arith.addf %126, %125 : vector<1x256xf32>
    %128 = arith.divf %126, %127 : vector<1x256xf32>
    %129 = vector.extract_strided_slice %128 {offsets = [0, 0], sizes = [1, 128], strides = [1, 1]} : vector<1x256xf32> to vector<1x128xf32>
    %130 = vector.extract_strided_slice %128 {offsets = [0, 128], sizes = [1, 128], strides = [1, 1]} : vector<1x256xf32> to vector<1x128xf32>
    %131 = vector.extract_strided_slice %120 {offsets = [0, 256], sizes = [1, 128], strides = [1, 1]} : vector<1x384xf32> to vector<1x128xf32>
    %132 = vector.extract_strided_slice %119 {offsets = [0, 256], sizes = [1, 128], strides = [1, 1]} : vector<1x384xf32> to vector<1x128xf32>
    %133 = arith.addf %132, %15 : vector<1x128xf32>
    %134 = arith.mulf %129, %133 : vector<1x128xf32>
    %135 = arith.addf %131, %134 : vector<1x128xf32>
    %136 = math.tanh %135 : vector<1x128xf32>
    %cst_29 = arith.constant 1.000000e+00 : f32
    %137 = vector.broadcast %cst_29 : f32 to vector<1x128xf32>
    %138 = arith.subf %137, %130 : vector<1x128xf32>
    %139 = arith.mulf %138, %136 : vector<1x128xf32>
    %140 = arith.mulf %130, %117 : vector<1x128xf32>
    %141 = arith.addf %139, %140 : vector<1x128xf32>
    %142 = arith.truncf %141 : vector<1x128xf32> to vector<1x128xbf16>
    %cst_30 = arith.constant dense<0.000000e+00> : vector<1x384xf32>
    %143 = tpu.matmul %142, %20, %cst_30 {dimension_numbers = #tpu.dot_dimension_numbers<[1], [0], [0], [1], [0, 0, 1, 1], [], []>} : vector<1x128xbf16>, vector<128x384xbf16>, vector<1x384xf32> -> vector<1x384xf32>
    %144 = vector.extract_strided_slice %19 {offsets = [5, 0], sizes = [1, 384], strides = [1, 1]} : vector<8x384xf32> to vector<1x384xf32>
    %145 = vector.extract_strided_slice %144 {offsets = [0, 0], sizes = [1, 256], strides = [1, 1]} : vector<1x384xf32> to vector<1x256xf32>
    %146 = vector.extract_strided_slice %143 {offsets = [0, 0], sizes = [1, 256], strides = [1, 1]} : vector<1x384xf32> to vector<1x256xf32>
    %147 = arith.addf %145, %146 : vector<1x256xf32>
    %148 = arith.negf %147 : vector<1x256xf32>
    %149 = math.exp %148 : vector<1x256xf32>
    %cst_31 = arith.constant 1.000000e+00 : f32
    %150 = vector.broadcast %cst_31 : f32 to vector<1x256xf32>
    %151 = arith.addf %150, %149 : vector<1x256xf32>
    %152 = arith.divf %150, %151 : vector<1x256xf32>
    %153 = vector.extract_strided_slice %152 {offsets = [0, 0], sizes = [1, 128], strides = [1, 1]} : vector<1x256xf32> to vector<1x128xf32>
    %154 = vector.extract_strided_slice %152 {offsets = [0, 128], sizes = [1, 128], strides = [1, 1]} : vector<1x256xf32> to vector<1x128xf32>
    %155 = vector.extract_strided_slice %144 {offsets = [0, 256], sizes = [1, 128], strides = [1, 1]} : vector<1x384xf32> to vector<1x128xf32>
    %156 = vector.extract_strided_slice %143 {offsets = [0, 256], sizes = [1, 128], strides = [1, 1]} : vector<1x384xf32> to vector<1x128xf32>
    %157 = arith.addf %156, %15 : vector<1x128xf32>
    %158 = arith.mulf %153, %157 : vector<1x128xf32>
    %159 = arith.addf %155, %158 : vector<1x128xf32>
    %160 = math.tanh %159 : vector<1x128xf32>
    %cst_32 = arith.constant 1.000000e+00 : f32
    %161 = vector.broadcast %cst_32 : f32 to vector<1x128xf32>
    %162 = arith.subf %161, %154 : vector<1x128xf32>
    %163 = arith.mulf %162, %160 : vector<1x128xf32>
    %164 = arith.mulf %154, %141 : vector<1x128xf32>
    %165 = arith.addf %163, %164 : vector<1x128xf32>
    %166 = arith.truncf %165 : vector<1x128xf32> to vector<1x128xbf16>
    %cst_33 = arith.constant dense<0.000000e+00> : vector<1x384xf32>
    %167 = tpu.matmul %166, %20, %cst_33 {dimension_numbers = #tpu.dot_dimension_numbers<[1], [0], [0], [1], [0, 0, 1, 1], [], []>} : vector<1x128xbf16>, vector<128x384xbf16>, vector<1x384xf32> -> vector<1x384xf32>
    %168 = vector.extract_strided_slice %19 {offsets = [6, 0], sizes = [1, 384], strides = [1, 1]} : vector<8x384xf32> to vector<1x384xf32>
    %169 = vector.extract_strided_slice %168 {offsets = [0, 0], sizes = [1, 256], strides = [1, 1]} : vector<1x384xf32> to vector<1x256xf32>
    %170 = vector.extract_strided_slice %167 {offsets = [0, 0], sizes = [1, 256], strides = [1, 1]} : vector<1x384xf32> to vector<1x256xf32>
    %171 = arith.addf %169, %170 : vector<1x256xf32>
    %172 = arith.negf %171 : vector<1x256xf32>
    %173 = math.exp %172 : vector<1x256xf32>
    %cst_34 = arith.constant 1.000000e+00 : f32
    %174 = vector.broadcast %cst_34 : f32 to vector<1x256xf32>
    %175 = arith.addf %174, %173 : vector<1x256xf32>
    %176 = arith.divf %174, %175 : vector<1x256xf32>
    %177 = vector.extract_strided_slice %176 {offsets = [0, 0], sizes = [1, 128], strides = [1, 1]} : vector<1x256xf32> to vector<1x128xf32>
    %178 = vector.extract_strided_slice %176 {offsets = [0, 128], sizes = [1, 128], strides = [1, 1]} : vector<1x256xf32> to vector<1x128xf32>
    %179 = vector.extract_strided_slice %168 {offsets = [0, 256], sizes = [1, 128], strides = [1, 1]} : vector<1x384xf32> to vector<1x128xf32>
    %180 = vector.extract_strided_slice %167 {offsets = [0, 256], sizes = [1, 128], strides = [1, 1]} : vector<1x384xf32> to vector<1x128xf32>
    %181 = arith.addf %180, %15 : vector<1x128xf32>
    %182 = arith.mulf %177, %181 : vector<1x128xf32>
    %183 = arith.addf %179, %182 : vector<1x128xf32>
    %184 = math.tanh %183 : vector<1x128xf32>
    %cst_35 = arith.constant 1.000000e+00 : f32
    %185 = vector.broadcast %cst_35 : f32 to vector<1x128xf32>
    %186 = arith.subf %185, %178 : vector<1x128xf32>
    %187 = arith.mulf %186, %184 : vector<1x128xf32>
    %188 = arith.mulf %178, %165 : vector<1x128xf32>
    %189 = arith.addf %187, %188 : vector<1x128xf32>
    %190 = arith.truncf %189 : vector<1x128xf32> to vector<1x128xbf16>
    %cst_36 = arith.constant dense<0.000000e+00> : vector<1x384xf32>
    %191 = tpu.matmul %190, %20, %cst_36 {dimension_numbers = #tpu.dot_dimension_numbers<[1], [0], [0], [1], [0, 0, 1, 1], [], []>} : vector<1x128xbf16>, vector<128x384xbf16>, vector<1x384xf32> -> vector<1x384xf32>
    %192 = vector.extract_strided_slice %19 {offsets = [7, 0], sizes = [1, 384], strides = [1, 1]} : vector<8x384xf32> to vector<1x384xf32>
    %193 = vector.extract_strided_slice %192 {offsets = [0, 0], sizes = [1, 256], strides = [1, 1]} : vector<1x384xf32> to vector<1x256xf32>
    %194 = vector.extract_strided_slice %191 {offsets = [0, 0], sizes = [1, 256], strides = [1, 1]} : vector<1x384xf32> to vector<1x256xf32>
    %195 = arith.addf %193, %194 : vector<1x256xf32>
    %196 = arith.negf %195 : vector<1x256xf32>
    %197 = math.exp %196 : vector<1x256xf32>
    %cst_37 = arith.constant 1.000000e+00 : f32
    %198 = vector.broadcast %cst_37 : f32 to vector<1x256xf32>
    %199 = arith.addf %198, %197 : vector<1x256xf32>
    %200 = arith.divf %198, %199 : vector<1x256xf32>
    %201 = vector.extract_strided_slice %200 {offsets = [0, 0], sizes = [1, 128], strides = [1, 1]} : vector<1x256xf32> to vector<1x128xf32>
    %202 = vector.extract_strided_slice %200 {offsets = [0, 128], sizes = [1, 128], strides = [1, 1]} : vector<1x256xf32> to vector<1x128xf32>
    %203 = vector.extract_strided_slice %192 {offsets = [0, 256], sizes = [1, 128], strides = [1, 1]} : vector<1x384xf32> to vector<1x128xf32>
    %204 = vector.extract_strided_slice %191 {offsets = [0, 256], sizes = [1, 128], strides = [1, 1]} : vector<1x384xf32> to vector<1x128xf32>
    %205 = arith.addf %204, %15 : vector<1x128xf32>
    %206 = arith.mulf %201, %205 : vector<1x128xf32>
    %207 = arith.addf %203, %206 : vector<1x128xf32>
    %208 = math.tanh %207 : vector<1x128xf32>
    %cst_38 = arith.constant 1.000000e+00 : f32
    %209 = vector.broadcast %cst_38 : f32 to vector<1x128xf32>
    %210 = arith.subf %209, %202 : vector<1x128xf32>
    %211 = arith.mulf %210, %208 : vector<1x128xf32>
    %212 = arith.mulf %202, %189 : vector<1x128xf32>
    %213 = arith.addf %211, %212 : vector<1x128xf32>
    %214 = tpu.concatenate %45, %69, %93, %117, %141, %165, %189, %213 in 0 : vector<1x128xf32>, vector<1x128xf32>, vector<1x128xf32>, vector<1x128xf32>, vector<1x128xf32>, vector<1x128xf32>, vector<1x128xf32>, vector<1x128xf32> -> vector<8x128xf32>
    %215 = arith.truncf %214 : vector<8x128xf32> to vector<8x128xbf16>
    %c0_39 = arith.constant 0 : index
    %c0_40 = arith.constant 0 : index
    %216 = vector.load %arg7[%c0_39, %c0_40] : memref<128x128xbf16, #tpu.memory_space<vmem>>, vector<128x128xbf16>
    %cst_41 = arith.constant dense<0.000000e+00> : vector<8x128xf32>
    %217 = tpu.matmul %215, %216, %cst_41 {dimension_numbers = #tpu.dot_dimension_numbers<[1], [0], [0], [1], [0, 0, 1, 1], [], []>} : vector<8x128xbf16>, vector<128x128xbf16>, vector<8x128xf32> -> vector<8x128xf32>
    %c0_42 = arith.constant 0 : index
    %c0_43 = arith.constant 0 : index
    %218 = vector.load %arg8[%c0_42, %c0_43] : memref<1x128xf32, #tpu.memory_space<vmem>>, vector<1x128xf32>
    %219 = vector.broadcast %218 : vector<1x128xf32> to vector<8x128xf32>
    %220 = arith.addf %217, %219 : vector<8x128xf32>
    %221 = tpu.iota {dimensions = array<i32: 1>} : vector<8x128xi32>
    %c64_i32 = arith.constant 64 : i32
    %222 = vector.broadcast %c64_i32 : i32 to vector<8x128xi32>
    %223 = arith.cmpi slt, %221, %222 : vector<8x128xi32>
    %cst_44 = arith.constant -1.000000e+30 : f32
    %224 = vector.broadcast %cst_44 : f32 to vector<8x128xf32>
    %225 = arith.select %223, %220, %224 : vector<8x128xi1>, vector<8x128xf32>
    %cst_45 = arith.constant dense<0xFF800000> : vector<8xf32>
    %226 = vector.multi_reduction <maximumf>, %225, %cst_45 [1] : vector<8x128xf32> to vector<8xf32>
    %227 = vector.shape_cast %226 : vector<8xf32> to vector<8x1xf32>
    %228 = vector.broadcast %227 : vector<8x1xf32> to vector<8x128xf32>
    %229 = arith.subf %225, %228 : vector<8x128xf32>
    %230 = math.exp %229 : vector<8x128xf32>
    %cst_46 = arith.constant dense<0.000000e+00> : vector<8xf32>
    %231 = vector.multi_reduction <add>, %230, %cst_46 [1] : vector<8x128xf32> to vector<8xf32>
    %232 = vector.shape_cast %231 : vector<8xf32> to vector<8x1xf32>
    %233 = math.log %232 : vector<8x1xf32>
    %234 = vector.broadcast %233 : vector<8x1xf32> to vector<8x128xf32>
    %235 = arith.subf %229, %234 : vector<8x128xf32>
    %c0_47 = arith.constant 0 : index
    %c0_48 = arith.constant 0 : index
    %236 = vector.load %arg9[%c0_47, %c0_48] : memref<8x128xf32, #tpu.memory_space<vmem>>, vector<8x128xf32>
    tpu.vector_store %arg9[%c0_47, %c0_48], %235 {strides = array<i32>} : memref<8x128xf32, #tpu.memory_space<vmem>>, vector<8x128xf32>,
    %c0_49 = arith.constant 0 : index
    %c0_50 = arith.constant 0 : index
    %237 = vector.load %arg10[%c0_49, %c0_50] : memref<1x128xf32, #tpu.memory_space<vmem>>, vector<1x128xf32>
    tpu.vector_store %arg10[%c0_49, %c0_50], %213 {strides = array<i32>} : memref<1x128xf32, #tpu.memory_space<vmem>>, vector<1x128xf32>,
    return
  }
  func.func @transform_0(%arg0: i32) -> (i32, i32) {
    %c0_i32 = arith.constant 0 : i32
    %c0_i32_0 = arith.constant 0 : i32
    %c0_i32_1 = arith.constant 0 : i32
    return %c0_i32, %c0_i32_0 : i32, i32
  }
  func.func @transform_1(%arg0: i32) -> (i32, i32) {
    %c0_i32 = arith.constant 0 : i32
    %c0_i32_0 = arith.constant 0 : i32
    %c0_i32_1 = arith.constant 0 : i32
    return %c0_i32, %c0_i32_0 : i32, i32
  }
  func.func @transform_2(%arg0: i32) -> (i32, i32) {
    %c0_i32 = arith.constant 0 : i32
    %c0_i32_0 = arith.constant 0 : i32
    %c0_i32_1 = arith.constant 0 : i32
    return %c0_i32, %c0_i32_0 : i32, i32
  }
  func.func @transform_3(%arg0: i32) -> (i32, i32) {
    %c0_i32 = arith.constant 0 : i32
    %c0_i32_0 = arith.constant 0 : i32
    %c0_i32_1 = arith.constant 0 : i32
    return %c0_i32, %c0_i32_0 : i32, i32
  }
  func.func @transform_4(%arg0: i32) -> (i32, i32) {
    %c0_i32 = arith.constant 0 : i32
    %c0_i32_0 = arith.constant 0 : i32
    %c0_i32_1 = arith.constant 0 : i32
    return %c0_i32, %c0_i32_0 : i32, i32
  }
  func.func @transform_5(%arg0: i32) -> (i32, i32) {
    %c0_i32 = arith.constant 0 : i32
    %c0_i32_0 = arith.constant 0 : i32
    %c0_i32_1 = arith.constant 0 : i32
    return %c0_i32, %c0_i32_0 : i32, i32
  }
  func.func @transform_6(%arg0: i32) -> (i32, i32) {
    %c0_i32 = arith.constant 0 : i32
    %c0_i32_0 = arith.constant 0 : i32
    %c0_i32_1 = arith.constant 0 : i32
    return %c0_i32, %c0_i32_0 : i32, i32
  }
  func.func @transform_7(%arg0: i32) -> (i32, i32) {
    %c0_i32 = arith.constant 0 : i32
    %c0_i32_0 = arith.constant 0 : i32
    %c0_i32_1 = arith.constant 0 : i32
    return %c0_i32, %c0_i32_0 : i32, i32
  }
  func.func @transform_8(%arg0: i32) -> (i32, i32) {
    %c0_i32 = arith.constant 0 : i32
    %c0_i32_0 = arith.constant 0 : i32
    %c0_i32_1 = arith.constant 0 : i32
    return %c0_i32, %c0_i32_0 : i32, i32
  }
  func.func @transform_9(%arg0: i32) -> (i32, i32) {
    %c0_i32 = arith.constant 0 : i32
    %c0_i32_0 = arith.constant 0 : i32
    %c0_i32_1 = arith.constant 0 : i32
    return %c0_i32, %c0_i32_0 : i32, i32
  }
}

</mosaic_0001>

<llo_original>
// kernel: tpu_custom_call.1
$region0: #{tpu_custom_call.1}
  #allocation0 [shape = 'u32[]', space=smem, size = 0x4, offset = 0x4, fixed_abs, tag = 'smem constant byte address 0x4 - core index']
  #allocation1 [shape = 'u32[144,128]{1,0:T(1,128)}', space=vmem, size = 0x12000, scoped, tag = 'internal scratch']
  %s0 = inlined_call_operand.vmem [shape: s32[8,1], index: 0, kind: input, shape index: {}]
  %s1 = inlined_call_operand.vmem [shape: f32[1,128], index: 1, kind: input, shape index: {}]
  %s2 = inlined_call_operand.hbm [shape: bf16[128,128], index: 2, kind: input, shape index: {}]
  %s3 = inlined_call_operand.hbm [shape: bf16[128,384], index: 3, kind: input, shape index: {}]
  %s4 = inlined_call_operand.hbm [shape: bf16[128,384], index: 4, kind: input, shape index: {}]
  %s5 = inlined_call_operand.vmem [shape: f32[1,512], index: 5, kind: input, shape index: {}]
  %s6 = inlined_call_operand.hbm [shape: bf16[128,128], index: 6, kind: input, shape index: {}]
  %s7 = inlined_call_operand.vmem [shape: f32[1,128], index: 7, kind: input, shape index: {}]
  %s8 = inlined_call_operand.hbm [shape: f32[8,128], index: 8, kind: output, shape index: {0}]
  %s9 = inlined_call_operand.hbm [shape: f32[1,128], index: 9, kind: output, shape index: {1}]
  %10 = xla_tuple %s8, %s9
  %s11 = sld [smem:[#allocation0]]
  $region66: #{tpu_custom_call.1} parent=0
    _
  %s13 = ssub.s32 1, %s11
  %s14 = scalar_select 0, %s13, %s11
  $region1: #{tpu_custom_call.1} parent=0
    #allocation2 [shape = 'u8[32768]{0}', space=vmem, size = 0x8000, scoped, tag = 'input window, operand 2, single buffered']
    #allocation3 [shape = 's32[1]{0}', space=sflag, size = 0x4, scoped, tag = 'scoped memory for tpu_custom_call.1']
    #allocation4 [shape = 's32[1]{0}', space=sflag, size = 0x4, scoped, tag = 'scoped memory for tpu_custom_call.1']
    #allocation5 [shape = 'u8[98304]{0}', space=vmem, size = 0x18000, scoped, tag = 'input window, operand 3, single buffered']
    #allocation6 [shape = 's32[1]{0}', space=sflag, size = 0x4, scoped, tag = 'scoped memory for tpu_custom_call.1']
    #allocation7 [shape = 'u8[98304]{0}', space=vmem, size = 0x18000, scoped, tag = 'input window, operand 4, single buffered']
    #allocation8 [shape = 'u8[32768]{0}', space=vmem, size = 0x8000, scoped, tag = 'input window, operand 6, single buffered']
    #allocation9 [shape = 's32[1]{0}', space=sflag, size = 0x4, scoped, tag = 'scoped memory for tpu_custom_call.1']
    #allocation10 [shape = 'u8[4096]{0}', space=vmem, size = 0x1000, scoped, tag = 'output window, operand 0, single buffered']
    #allocation11 [shape = 'u8[512]{0}', space=vmem, size = 0x400, scoped, tag = 'output window, operand 1, single buffered']
    #allocation12 [shape = 's32[1]{0}', space=sflag, size = 0x4, scoped, tag = 'scoped memory for tpu_custom_call.1']
    %15 = vsyncpa [#allocation3], 0
    %16 = vsyncpa [#allocation6], 0
    %17 = vsyncpa [#allocation9], 0
    %18 = vsyncpa [#allocation4], 0
    %19 = vsyncpa [#allocation12], 0
    // Predicated region
    $region2: #{tpu_custom_call.1} parent=1 // pred_check
      _
    $region3: #{tpu_custom_call.1} parent=1 // pred_check_branch
      %21 = sbr.rel (0) target = $region5
    $region4: #{tpu_custom_call.1} parent=1 // pred_region
      _
    $region5: #{tpu_custom_call.1} parent=1 // pred_fallthru
      _
    // Predicated region
    $region6: #{tpu_custom_call.1} parent=1 // pred_check
      _
    $region7: #{tpu_custom_call.1} parent=1 // pred_check_branch
      %23 = sbr.rel (0) target = $region9
    $region8: #{tpu_custom_call.1} parent=1 // pred_region
      _
    $region9: #{tpu_custom_call.1} parent=1 // pred_fallthru
      _
    // Predicated region
    $region10: #{tpu_custom_call.1} parent=1 // pred_check
      _
    $region11: #{tpu_custom_call.1} parent=1 // pred_check_branch
      %25 = sbr.rel (0) target = $region13
    $region12: #{tpu_custom_call.1} parent=1 // pred_region
      %s27 = ssub.s32 1024, 1024
      %28 = vsyncadd [#allocation3], %s27
      %s29 = sshll.u32 [#allocation2], 4
      %s30 = int_to_ptr.vmem [resolvable:$true] %s29
      %35 = dma.hbm_to_vmem [thread:$0]  %s2, 1024, %s30, [#allocation3], 64, 64, 4
    $region13: #{tpu_custom_call.1} parent=1 // pred_fallthru
      _
    // Predicated region
    $region14: #{tpu_custom_call.1} parent=1 // pred_check
      _
    $region15: #{tpu_custom_call.1} parent=1 // pred_check_branch
      %37 = sbr.rel (0) target = $region17
    $region16: #{tpu_custom_call.1} parent=1 // pred_region
      %s39 = ssub.s32 3072, 3072
      %40 = vsyncadd [#allocation6], %s39
      %s41 = sshll.u32 [#allocation5], 4
      %s42 = int_to_ptr.vmem [resolvable:$true] %s41
      %47 = dma.hbm_to_vmem [thread:$0]  %s3, 3072, %s42, [#allocation6], 192, 192, 12
    $region17: #{tpu_custom_call.1} parent=1 // pred_fallthru
      _
    // Predicated region
    $region18: #{tpu_custom_call.1} parent=1 // pred_check
      _
    $region19: #{tpu_custom_call.1} parent=1 // pred_check_branch
      %49 = sbr.rel (0) target = $region21
    $region20: #{tpu_custom_call.1} parent=1 // pred_region
      %s51 = ssub.s32 3072, 3072
      %52 = vsyncadd [#allocation6], %s51
      %s53 = sshll.u32 [#allocation7], 4
      %s54 = int_to_ptr.vmem [resolvable:$true] %s53
      %59 = dma.hbm_to_vmem [thread:$0]  %s4, 3072, %s54, [#allocation6], 192, 192, 12
    $region21: #{tpu_custom_call.1} parent=1 // pred_fallthru
      _
    // Predicated region
    $region22: #{tpu_custom_call.1} parent=1 // pred_check
      _
    $region23: #{tpu_custom_call.1} parent=1 // pred_check_branch
      %61 = sbr.rel (0) target = $region25
    $region24: #{tpu_custom_call.1} parent=1 // pred_region
      _
    $region25: #{tpu_custom_call.1} parent=1 // pred_fallthru
      _
    // Predicated region
    $region26: #{tpu_custom_call.1} parent=1 // pred_check
      _
    $region27: #{tpu_custom_call.1} parent=1 // pred_check_branch
      %63 = sbr.rel (0) target = $region29
    $region28: #{tpu_custom_call.1} parent=1 // pred_region
      %s65 = ssub.s32 1024, 1024
      %66 = vsyncadd [#allocation9], %s65
      %s67 = sshll.u32 [#allocation8], 4
      %s68 = int_to_ptr.vmem [resolvable:$true] %s67
      %73 = dma.hbm_to_vmem [thread:$0]  %s6, 1024, %s68, [#allocation9], 64, 64, 4
    $region29: #{tpu_custom_call.1} parent=1 // pred_fallthru
      _
    // Predicated region
    $region30: #{tpu_custom_call.1} parent=1 // pred_check
      _
    $region31: #{tpu_custom_call.1} parent=1 // pred_check_branch
      %75 = sbr.rel (0) target = $region33
    $region32: #{tpu_custom_call.1} parent=1 // pred_region
      _
    $region33: #{tpu_custom_call.1} parent=1 // pred_fallthru
      _
    // Predicated region
    $region34: #{tpu_custom_call.1} parent=1 // pred_check
      _
    $region35: #{tpu_custom_call.1} parent=1 // pred_check_branch
      %77 = sbr.rel (0) target = $region37
    $region36: #{tpu_custom_call.1} parent=1 // pred_region
      %78 = dma.done [#allocation3], 1024
    $region37: #{tpu_custom_call.1} parent=1 // pred_fallthru
      _
    // Predicated region
    $region38: #{tpu_custom_call.1} parent=1 // pred_check
      _
    $region39: #{tpu_custom_call.1} parent=1 // pred_check_branch
      %80 = sbr.rel (0) target = $region41
    $region40: #{tpu_custom_call.1} parent=1 // pred_region
      %81 = dma.done [#allocation6], 3072
    $region41: #{tpu_custom_call.1} parent=1 // pred_fallthru
      _
    // Predicated region
    $region42: #{tpu_custom_call.1} parent=1 // pred_check
      _
    $region43: #{tpu_custom_call.1} parent=1 // pred_check_branch
      %83 = sbr.rel (0) target = $region45
    $region44: #{tpu_custom_call.1} parent=1 // pred_region
      %84 = dma.done [#allocation6], 3072
    $region45: #{tpu_custom_call.1} parent=1 // pred_fallthru
      _
    // Predicated region
    $region46: #{tpu_custom_call.1} parent=1 // pred_check
      _
    $region47: #{tpu_custom_call.1} parent=1 // pred_check_branch
      %86 = sbr.rel (0) target = $region49
    $region48: #{tpu_custom_call.1} parent=1 // pred_region
      %87 = dma.done [#allocation9], 1024
    $region49: #{tpu_custom_call.1} parent=1 // pred_fallthru
      _
    %v89 = vld [vmem:[%s0] sm:$0xff]
    %v90 = vlaneseq
    %v91 = vand.u32 %v90, 127
    %92 = vset.pattern.permute.xlu0 0
    %93 = vperm.xlu0 %92, %v89
    %v94 = vpop.permute.xlu0 %93
    %vm95 = vcmp.eq.s32.totalorder %v91, %v94
    %v96 = vsel %vm95, 1.0, 0.0
    %v97 = vpack.c.bf16 %v96, %v96
    %v98 = vld [vmem:[#allocation2] sm:$0xf]
    %v99 = vld [vmem:[#allocation2 + $0x4] sm:$0xf]
    %v100 = vld [vmem:[#allocation2 + $0x8] sm:$0xf]
    %v101 = vld [vmem:[#allocation2 + $0xc] sm:$0xf]
    %v102 = vld [vmem:[#allocation2 + $0x10] sm:$0xf]
    %v103 = vld [vmem:[#allocation2 + $0x14] sm:$0xf]
    %v104 = vld [vmem:[#allocation2 + $0x18] sm:$0xf]
    %v105 = vld [vmem:[#allocation2 + $0x1c] sm:$0xf]
    %v106 = vld [vmem:[#allocation2 + $0x20] sm:$0xf]
    %v107 = vld [vmem:[#allocation2 + $0x24] sm:$0xf]
    %v108 = vld [vmem:[#allocation2 + $0x28] sm:$0xf]
    %v109 = vld [vmem:[#allocation2 + $0x2c] sm:$0xf]
    %v110 = vld [vmem:[#allocation2 + $0x30] sm:$0xf]
    %v111 = vld [vmem:[#allocation2 + $0x34] sm:$0xf]
    %v112 = vld [vmem:[#allocation2 + $0x38] sm:$0xf]
    %v113 = vld [vmem:[#allocation2 + $0x3c] sm:$0xf]
    %v130 = vunpack.c.l.b16 %v98
    %v131 = vunpack.c.l.b16 %v99
    %v132 = vunpack.c.l.b16 %v100
    %v133 = vunpack.c.l.b16 %v101
    %v134 = vunpack.c.l.b16 %v102
    %v135 = vunpack.c.l.b16 %v103
    %v136 = vunpack.c.l.b16 %v104
    %v137 = vunpack.c.l.b16 %v105
    %v138 = vunpack.c.l.b16 %v106
    %v139 = vunpack.c.l.b16 %v107
    %v140 = vunpack.c.l.b16 %v108
    %v141 = vunpack.c.l.b16 %v109
    %v142 = vunpack.c.l.b16 %v110
    %v143 = vunpack.c.l.b16 %v111
    %v144 = vunpack.c.l.b16 %v112
    %v145 = vunpack.c.l.b16 %v113
    %v146 = vpack.c.b16 %v131, %v130
    %v147 = vpack.c.b16 %v133, %v132
    %v148 = vpack.c.b16 %v135, %v134
    %v149 = vpack.c.b16 %v137, %v136
    %v150 = vpack.c.b16 %v139, %v138
    %v151 = vpack.c.b16 %v141, %v140
    %v152 = vpack.c.b16 %v143, %v142
    %v153 = vpack.c.b16 %v145, %v144
    %162 = vmatprep.subr.bf16.mxu0 0
    %163 = vmatpush1.bf16.msra.mxu0 %v153
    %164 = vmatprep.subr.bf16.mxu0 0
    %165 = vmatpush1.bf16.msra.mxu0 %v152
    %166 = vmatprep.subr.bf16.mxu0 0
    %167 = vmatpush1.bf16.msra.mxu0 %v151
    %168 = vmatprep.subr.bf16.mxu0 0
    %169 = vmatpush1.bf16.msra.mxu0 %v150
    %170 = vmatprep.subr.bf16.mxu0 0
    %171 = vmatpush1.bf16.msra.mxu0 %v149
    %172 = vmatprep.subr.bf16.mxu0 0
    %173 = vmatpush1.bf16.msra.mxu0 %v148
    %174 = vmatprep.subr.bf16.mxu0 0
    %175 = vmatpush1.bf16.msra.mxu0 %v147
    %176 = vmatprep.subr.bf16.mxu0 0
    %177 = vmatpush1.bf16.msra.mxu0 %v146
    %178 = vmatprep.subr.bf16.mxu0 0
    %179 = vmatpush2.bf16.msra.mxu0 0
    %180 = vmatprep.subr.bf16.mxu0 0
    %181 = vmatpush2.bf16.msra.mxu0 0
    %182 = vmatprep.subr.bf16.mxu0 0
    %183 = vmatpush2.bf16.msra.mxu0 0
    %184 = vmatprep.subr.bf16.mxu0 0
    %185 = vmatpush2.bf16.msra.mxu0 0
    %186 = vmatprep.subr.bf16.mxu0 0
    %187 = vmatpush2.bf16.msra.mxu0 0
    %188 = vmatprep.subr.bf16.mxu0 0
    %189 = vmatpush2.bf16.msra.mxu0 0
    %190 = vmatprep.subr.bf16.mxu0 0
    %191 = vmatpush2.bf16.msra.mxu0 0
    %192 = vmatprep.subr.bf16.mxu0 0
    %193 = vmatpush2.bf16.msra.mxu0 0
    %194 = vmatprep.mubr.bf16.mxu0 0
    %195 = vmatmul.mubr.bf16.gmra.mxu0 %v97
    %v196 = vpop.f32.mrf.mxu0
    %v197 = vadd.f32 0.0, %v196
    %v198 = vpop.f32.mrf.mxu0
    %v199 = vpop.f32.mrf.mxu0
    %v200 = vpop.f32.mrf.mxu0
    %201 = vdwg.mxu0
    %v202 = vmax.f32 %v197, 0.0
    %v203 = vpack.c.bf16 %v202, %v202
    %v204 = vld [vmem:[%s5] sm:$0xf]
    %v205 = vld [vmem:[#allocation5] sm:$0xff]
    %v206 = vld [vmem:[#allocation5 + $0x8] sm:$0xf]
    %v207 = vld [vmem:[#allocation5 + $0xc] sm:$0xff]
    %v208 = vld [vmem:[#allocation5 + $0x14] sm:$0xf]
    %v209 = vld [vmem:[#allocation5 + $0x18] sm:$0xff]
    %v210 = vld [vmem:[#allocation5 + $0x20] sm:$0xf]
    %v211 = vld [vmem:[#allocation5 + $0x24] sm:$0xff]
    %v212 = vld [vmem:[#allocation5 + $0x2c] sm:$0xf]
    %v213 = vld [vmem:[#allocation5 + $0x30] sm:$0xff]
    %v214 = vld [vmem:[#allocation5 + $0x38] sm:$0xf]
    %v215 = vld [vmem:[#allocation5 + $0x3c] sm:$0xff]
    %v216 = vld [vmem:[#allocation5 + $0x44] sm:$0xf]
    %v217 = vld [vmem:[#allocation5 + $0x48] sm:$0xff]
    %v218 = vld [vmem:[#allocation5 + $0x50] sm:$0xf]
    %v219 = vld [vmem:[#allocation5 + $0x54] sm:$0xff]
    %v220 = vld [vmem:[#allocation5 + $0x5c] sm:$0xf]
    %v221 = vld [vmem:[#allocation5 + $0x60] sm:$0xff]
    %v222 = vld [vmem:[#allocation5 + $0x68] sm:$0xf]
    %v223 = vld [vmem:[#allocation5 + $0x6c] sm:$0xff]
    %v224 = vld [vmem:[#allocation5 + $0x74] sm:$0xf]
    %v225 = vld [vmem:[#allocation5 + $0x78] sm:$0xff]
    %v226 = vld [vmem:[#allocation5 + $0x80] sm:$0xf]
    %v227 = vld [vmem:[#allocation5 + $0x84] sm:$0xff]
    %v228 = vld [vmem:[#allocation5 + $0x8c] sm:$0xf]
    %v229 = vld [vmem:[#allocation5 + $0x90] sm:$0xff]
    %v230 = vld [vmem:[#allocation5 + $0x98] sm:$0xf]
    %v231 = vld [vmem:[#allocation5 + $0x9c] sm:$0xff]
    %v232 = vld [vmem:[#allocation5 + $0xa4] sm:$0xf]
    %v233 = vld [vmem:[#allocation5 + $0xa8] sm:$0xff]
    %v234 = vld [vmem:[#allocation5 + $0xb0] sm:$0xf]
    %v235 = vld [vmem:[#allocation5 + $0xb4] sm:$0xff]
    %v236 = vld [vmem:[#allocation5 + $0xbc] sm:$0xf]
    %v238 = vlaneseq
    %v239 = vshrl.u32 %v238, 7
    %v240 = vsub.s32 0, %v239
    %v241 = vrot.slane %v204, %v240
    %v242 = vlaneseq
    %v243 = vshrl.u32 %v242, 7
    %v244 = vsub.s32 1, %v243
    %v245 = vrot.slane %v204, %v244
    %v246 = vlaneseq
    %v247 = vshrl.u32 %v246, 7
    %v248 = vsub.s32 2, %v247
    %v249 = vrot.slane %v204, %v248
    %v285 = vunpack.c.l.b16 %v205
    %v286 = vunpack.c.h.b16 %v205
    %v287 = vunpack.c.l.b16 %v206
    %v288 = vunpack.c.l.b16 %v207
    %v289 = vunpack.c.h.b16 %v207
    %v290 = vunpack.c.l.b16 %v208
    %v291 = vunpack.c.l.b16 %v209
    %v292 = vunpack.c.h.b16 %v209
    %v293 = vunpack.c.l.b16 %v210
    %v294 = vunpack.c.l.b16 %v211
    %v295 = vunpack.c.h.b16 %v211
    %v296 = vunpack.c.l.b16 %v212
    %v297 = vunpack.c.l.b16 %v213
    %v298 = vunpack.c.h.b16 %v213
    %v299 = vunpack.c.l.b16 %v214
    %v300 = vunpack.c.l.b16 %v215
    %v301 = vunpack.c.h.b16 %v215
    %v302 = vunpack.c.l.b16 %v216
    %v303 = vunpack.c.l.b16 %v217
    %v304 = vunpack.c.h.b16 %v217
    %v305 = vunpack.c.l.b16 %v218
    %v306 = vunpack.c.l.b16 %v219
    %v307 = vunpack.c.h.b16 %v219
    %v308 = vunpack.c.l.b16 %v220
    %v309 = vunpack.c.l.b16 %v221
    %v310 = vunpack.c.h.b16 %v221
    %v311 = vunpack.c.l.b16 %v222
    %v312 = vunpack.c.l.b16 %v223
    %v313 = vunpack.c.h.b16 %v223
    %v314 = vunpack.c.l.b16 %v224
    %v315 = vunpack.c.l.b16 %v225
    %v316 = vunpack.c.h.b16 %v225
    %v317 = vunpack.c.l.b16 %v226
    %v318 = vunpack.c.l.b16 %v227
    %v319 = vunpack.c.h.b16 %v227
    %v320 = vunpack.c.l.b16 %v228
    %v321 = vunpack.c.l.b16 %v229
    %v322 = vunpack.c.h.b16 %v229
    %v323 = vunpack.c.l.b16 %v230
    %v324 = vunpack.c.l.b16 %v231
    %v325 = vunpack.c.h.b16 %v231
    %v326 = vunpack.c.l.b16 %v232
    %v327 = vunpack.c.l.b16 %v233
    %v328 = vunpack.c.h.b16 %v233
    %v329 = vunpack.c.l.b16 %v234
    %v330 = vunpack.c.l.b16 %v235
    %v331 = vunpack.c.h.b16 %v235
    %v332 = vunpack.c.l.b16 %v236
    %v333 = vpack.c.b16 %v288, %v285
    %v334 = vpack.c.b16 %v289, %v286
    %v335 = vpack.c.b16 %v290, %v287
    %v336 = vpack.c.b16 %v294, %v291
    %v337 = vpack.c.b16 %v295, %v292
    %v338 = vpack.c.b16 %v296, %v293
    %v339 = vpack.c.b16 %v300, %v297
    %v340 = vpack.c.b16 %v301, %v298
    %v341 = vpack.c.b16 %v302, %v299
    %v342 = vpack.c.b16 %v306, %v303
    %v343 = vpack.c.b16 %v307, %v304
    %v344 = vpack.c.b16 %v308, %v305
    %v345 = vpack.c.b16 %v312, %v309
    %v346 = vpack.c.b16 %v313, %v310
    %v347 = vpack.c.b16 %v314, %v311
    %v348 = vpack.c.b16 %v318, %v315
    %v349 = vpack.c.b16 %v319, %v316
    %v350 = vpack.c.b16 %v320, %v317
    %v351 = vpack.c.b16 %v324, %v321
    %v352 = vpack.c.b16 %v325, %v322
    %v353 = vpack.c.b16 %v326, %v323
    %v354 = vpack.c.b16 %v330, %v327
    %v355 = vpack.c.b16 %v331, %v328
    %v356 = vpack.c.b16 %v332, %v329
    %381 = vmatprep.subr.bf16.mxu0 %v355
    %382 = vmatpush1.bf16.msra.mxu0 %v354
    %383 = vmatprep.subr.bf16.mxu0 %v352
    %384 = vmatpush1.bf16.msra.mxu0 %v351
    %385 = vmatprep.subr.bf16.mxu0 %v349
    %386 = vmatpush1.bf16.msra.mxu0 %v348
    %387 = vmatprep.subr.bf16.mxu0 %v346
    %388 = vmatpush1.bf16.msra.mxu0 %v345
    %389 = vmatprep.subr.bf16.mxu0 %v343
    %390 = vmatpush1.bf16.msra.mxu0 %v342
    %391 = vmatprep.subr.bf16.mxu0 %v340
    %392 = vmatpush1.bf16.msra.mxu0 %v339
    %393 = vmatprep.subr.bf16.mxu0 %v337
    %394 = vmatpush1.bf16.msra.mxu0 %v336
    %395 = vmatprep.subr.bf16.mxu0 %v334
    %396 = vmatpush1.bf16.msra.mxu0 %v333
    %397 = vmatprep.subr.bf16.mxu0 0
    %398 = vmatpush2.bf16.msra.mxu0 0
    %399 = vmatprep.subr.bf16.mxu0 0
    %400 = vmatpush2.bf16.msra.mxu0 0
    %401 = vmatprep.subr.bf16.mxu0 0
    %402 = vmatpush2.bf16.msra.mxu0 0
    %403 = vmatprep.subr.bf16.mxu0 0
    %404 = vmatpush2.bf16.msra.mxu0 0
    %405 = vmatprep.subr.bf16.mxu0 0
    %406 = vmatpush2.bf16.msra.mxu0 0
    %407 = vmatprep.subr.bf16.mxu0 0
    %408 = vmatpush2.bf16.msra.mxu0 0
    %409 = vmatprep.subr.bf16.mxu0 0
    %410 = vmatpush2.bf16.msra.mxu0 0
    %411 = vmatprep.subr.bf16.mxu0 0
    %412 = vmatpush2.bf16.msra.mxu0 0
    %413 = vmatprep.mubr.bf16.mxu0 0
    %414 = vmatmul.mubr.bf16.gmra.mxu0 %v203
    %v415 = vpop.f32.mrf.mxu0
    %v416 = vadd.f32 %v241, %v415
    %v417 = vpop.f32.mrf.mxu0
    %v418 = vadd.f32 %v245, %v417
    %v419 = vpop.f32.mrf.mxu0
    %v420 = vpop.f32.mrf.mxu0
    %421 = vdwg.mxu0
    %422 = vmatprep.subr.bf16.mxu0 0
    %423 = vmatpush1.bf16.msra.mxu0 %v356
    %424 = vmatprep.subr.bf16.mxu0 0
    %425 = vmatpush1.bf16.msra.mxu0 %v353
    %426 = vmatprep.subr.bf16.mxu0 0
    %427 = vmatpush1.bf16.msra.mxu0 %v350
    %428 = vmatprep.subr.bf16.mxu0 0
    %429 = vmatpush1.bf16.msra.mxu0 %v347
    %430 = vmatprep.subr.bf16.mxu0 0
    %431 = vmatpush1.bf16.msra.mxu0 %v344
    %432 = vmatprep.subr.bf16.mxu0 0
    %433 = vmatpush1.bf16.msra.mxu0 %v341
    %434 = vmatprep.subr.bf16.mxu0 0
    %435 = vmatpush1.bf16.msra.mxu0 %v338
    %436 = vmatprep.subr.bf16.mxu0 0
    %437 = vmatpush1.bf16.msra.mxu0 %v335
    %438 = vmatprep.subr.bf16.mxu0 0
    %439 = vmatpush2.bf16.msra.mxu0 0
    %440 = vmatprep.subr.bf16.mxu0 0
    %441 = vmatpush2.bf16.msra.mxu0 0
    %442 = vmatprep.subr.bf16.mxu0 0
    %443 = vmatpush2.bf16.msra.mxu0 0
    %444 = vmatprep.subr.bf16.mxu0 0
    %445 = vmatpush2.bf16.msra.mxu0 0
    %446 = vmatprep.subr.bf16.mxu0 0
    %447 = vmatpush2.bf16.msra.mxu0 0
    %448 = vmatprep.subr.bf16.mxu0 0
    %449 = vmatpush2.bf16.msra.mxu0 0
    %450 = vmatprep.subr.bf16.mxu0 0
    %451 = vmatpush2.bf16.msra.mxu0 0
    %452 = vmatprep.subr.bf16.mxu0 0
    %453 = vmatpush2.bf16.msra.mxu0 0
    %454 = vmatprep.mubr.bf16.mxu0 0
    %455 = vmatmul.mubr.bf16.gmra.mxu0 %v203
    %v456 = vpop.f32.mrf.mxu0
    %v457 = vadd.f32 %v249, %v456
    %v458 = vpop.f32.mrf.mxu0
    %v459 = vpop.f32.mrf.mxu0
    %v460 = vpop.f32.mrf.mxu0
    %461 = vdwg.mxu0
    %v462 = vld [vmem:[#allocation7] sm:$0xff]
    %v463 = vld [vmem:[#allocation7 + $0x8] sm:$0xf]
    %v464 = vld [vmem:[#allocation7 + $0xc] sm:$0xff]
    %v465 = vld [vmem:[#allocation7 + $0x14] sm:$0xf]
    %v466 = vld [vmem:[#allocation7 + $0x18] sm:$0xff]
    %v467 = vld [vmem:[#allocation7 + $0x20] sm:$0xf]
    %v468 = vld [vmem:[#allocation7 + $0x24] sm:$0xff]
    %v469 = vld [vmem:[#allocation7 + $0x2c] sm:$0xf]
    %v470 = vld [vmem:[#allocation7 + $0x30] sm:$0xff]
    %v471 = vld [vmem:[#allocation7 + $0x38] sm:$0xf]
    %v472 = vld [vmem:[#allocation7 + $0x3c] sm:$0xff]
    %v473 = vld [vmem:[#allocation7 + $0x44] sm:$0xf]
    %v474 = vld [vmem:[#allocation7 + $0x48] sm:$0xff]
    %v475 = vld [vmem:[#allocation7 + $0x50] sm:$0xf]
    %v476 = vld [vmem:[#allocation7 + $0x54] sm:$0xff]
    %v477 = vld [vmem:[#allocation7 + $0x5c] sm:$0xf]
    %v478 = vld [vmem:[#allocation7 + $0x60] sm:$0xff]
    %v479 = vld [vmem:[#allocation7 + $0x68] sm:$0xf]
    %v480 = vld [vmem:[#allocation7 + $0x6c] sm:$0xff]
    %v481 = vld [vmem:[#allocation7 + $0x74] sm:$0xf]
    %v482 = vld [vmem:[#allocation7 + $0x78] sm:$0xff]
    %v483 = vld [vmem:[#allocation7 + $0x80] sm:$0xf]
    %v484 = vld [vmem:[#allocation7 + $0x84] sm:$0xff]
    %v485 = vld [vmem:[#allocation7 + $0x8c] sm:$0xf]
    %v486 = vld [vmem:[#allocation7 + $0x90] sm:$0xff]
    %v487 = vld [vmem:[#allocation7 + $0x98] sm:$0xf]
    %v488 = vld [vmem:[#allocation7 + $0x9c] sm:$0xff]
    %v489 = vld [vmem:[#allocation7 + $0xa4] sm:$0xf]
    %v490 = vld [vmem:[#allocation7 + $0xa8] sm:$0xff]
    %v491 = vld [vmem:[#allocation7 + $0xb0] sm:$0xf]
    %v492 = vld [vmem:[#allocation7 + $0xb4] sm:$0xff]
    %v493 = vld [vmem:[#allocation7 + $0xbc] sm:$0xf]
    %v494 = vld [vmem:[%s1] sm:$0x1]
    %v495 = vpack.c.bf16 %v494, %v494
    %v528 = vunpack.c.l.b16 %v462
    %v529 = vunpack.c.h.b16 %v462
    %v530 = vunpack.c.l.b16 %v463
    %v531 = vunpack.c.l.b16 %v464
    %v532 = vunpack.c.h.b16 %v464
    %v533 = vunpack.c.l.b16 %v465
    %v534 = vunpack.c.l.b16 %v466
    %v535 = vunpack.c.h.b16 %v466
    %v536 = vunpack.c.l.b16 %v467
    %v537 = vunpack.c.l.b16 %v468
    %v538 = vunpack.c.h.b16 %v468
    %v539 = vunpack.c.l.b16 %v469
    %v540 = vunpack.c.l.b16 %v470
    %v541 = vunpack.c.h.b16 %v470
    %v542 = vunpack.c.l.b16 %v471
    %v543 = vunpack.c.l.b16 %v472
    %v544 = vunpack.c.h.b16 %v472
    %v545 = vunpack.c.l.b16 %v473
    %v546 = vunpack.c.l.b16 %v474
    %v547 = vunpack.c.h.b16 %v474
    %v548 = vunpack.c.l.b16 %v475
    %v549 = vunpack.c.l.b16 %v476
    %v550 = vunpack.c.h.b16 %v476
    %v551 = vunpack.c.l.b16 %v477
    %v552 = vunpack.c.l.b16 %v478
    %v553 = vunpack.c.h.b16 %v478
    %v554 = vunpack.c.l.b16 %v479
    %v555 = vunpack.c.l.b16 %v480
    %v556 = vunpack.c.h.b16 %v480
    %v557 = vunpack.c.l.b16 %v481
    %v558 = vunpack.c.l.b16 %v482
    %v559 = vunpack.c.h.b16 %v482
    %v560 = vunpack.c.l.b16 %v483
    %v561 = vunpack.c.l.b16 %v484
    %v562 = vunpack.c.h.b16 %v484
    %v563 = vunpack.c.l.b16 %v485
    %v564 = vunpack.c.l.b16 %v486
    %v565 = vunpack.c.h.b16 %v486
    %v566 = vunpack.c.l.b16 %v487
    %v567 = vunpack.c.l.b16 %v488
    %v568 = vunpack.c.h.b16 %v488
    %v569 = vunpack.c.l.b16 %v489
    %v570 = vunpack.c.l.b16 %v490
    %v571 = vunpack.c.h.b16 %v490
    %v572 = vunpack.c.l.b16 %v491
    %v573 = vunpack.c.l.b16 %v492
    %v574 = vunpack.c.h.b16 %v492
    %v575 = vunpack.c.l.b16 %v493
    %v576 = vpack.c.b16 %v531, %v528
    %v577 = vpack.c.b16 %v532, %v529
    %v578 = vpack.c.b16 %v533, %v530
    %v579 = vpack.c.b16 %v537, %v534
    %v580 = vpack.c.b16 %v538, %v535
    %v581 = vpack.c.b16 %v539, %v536
    %v582 = vpack.c.b16 %v543, %v540
    %v583 = vpack.c.b16 %v544, %v541
    %v584 = vpack.c.b16 %v545, %v542
    %v585 = vpack.c.b16 %v549, %v546
    %v586 = vpack.c.b16 %v550, %v547
    %v587 = vpack.c.b16 %v551, %v548
    %v588 = vpack.c.b16 %v555, %v552
    %v589 = vpack.c.b16 %v556, %v553
    %v590 = vpack.c.b16 %v557, %v554
    %v591 = vpack.c.b16 %v561, %v558
    %v592 = vpack.c.b16 %v562, %v559
    %v593 = vpack.c.b16 %v563, %v560
    %v594 = vpack.c.b16 %v567, %v564
    %v595 = vpack.c.b16 %v568, %v565
    %v596 = vpack.c.b16 %v569, %v566
    %v597 = vpack.c.b16 %v573, %v570
    %v598 = vpack.c.b16 %v574, %v571
    %v599 = vpack.c.b16 %v575, %v572
    %624 = vmatprep.subr.bf16.mxu0 %v598
    %625 = vmatpush1.bf16.msra.mxu0 %v597
    %626 = vmatprep.subr.bf16.mxu0 %v595
    %627 = vmatpush1.bf16.msra.mxu0 %v594
    %628 = vmatprep.subr.bf16.mxu0 %v592
    %629 = vmatpush1.bf16.msra.mxu0 %v591
    %630 = vmatprep.subr.bf16.mxu0 %v589
    %631 = vmatpush1.bf16.msra.mxu0 %v588
    %632 = vmatprep.subr.bf16.mxu0 %v586
    %633 = vmatpush1.bf16.msra.mxu0 %v585
    %634 = vmatprep.subr.bf16.mxu0 %v583
    %635 = vmatpush1.bf16.msra.mxu0 %v582
    %636 = vmatprep.subr.bf16.mxu0 %v580
    %637 = vmatpush1.bf16.msra.mxu0 %v579
    %638 = vmatprep.subr.bf16.mxu0 %v577
    %639 = vmatpush1.bf16.msra.mxu0 %v576
    %640 = vmatprep.subr.bf16.mxu0 0
    %641 = vmatpush2.bf16.msra.mxu0 0
    %642 = vmatprep.subr.bf16.mxu0 0
    %643 = vmatpush2.bf16.msra.mxu0 0
    %644 = vmatprep.subr.bf16.mxu0 0
    %645 = vmatpush2.bf16.msra.mxu0 0
    %646 = vmatprep.subr.bf16.mxu0 0
    %647 = vmatpush2.bf16.msra.mxu0 0
    %648 = vmatprep.subr.bf16.mxu0 0
    %649 = vmatpush2.bf16.msra.mxu0 0
    %650 = vmatprep.subr.bf16.mxu0 0
    %651 = vmatpush2.bf16.msra.mxu0 0
    %652 = vmatprep.subr.bf16.mxu0 0
    %653 = vmatpush2.bf16.msra.mxu0 0
    %654 = vmatprep.subr.bf16.mxu0 0
    %655 = vmatpush2.bf16.msra.mxu0 0
    %656 = vmatprep.mubr.bf16.mxu0 0
    %657 = vmatmul.mubr.bf16.gmra.mxu0 %v495
    %v658 = vpop.f32.mrf.mxu0
    %v659 = vadd.f32 0.0, %v658
    %v660 = vpop.f32.mrf.mxu0
    %v661 = vadd.f32 0.0, %v660
    %v662 = vpop.f32.mrf.mxu0
    %v663 = vpop.f32.mrf.mxu0
    %664 = vdwg.mxu0
    %665 = vmatprep.subr.bf16.mxu0 0
    %666 = vmatpush1.bf16.msra.mxu0 %v599
    %667 = vmatprep.subr.bf16.mxu0 0
    %668 = vmatpush1.bf16.msra.mxu0 %v596
    %669 = vmatprep.subr.bf16.mxu0 0
    %670 = vmatpush1.bf16.msra.mxu0 %v593
    %671 = vmatprep.subr.bf16.mxu0 0
    %672 = vmatpush1.bf16.msra.mxu0 %v590
    %673 = vmatprep.subr.bf16.mxu0 0
    %674 = vmatpush1.bf16.msra.mxu0 %v587
    %675 = vmatprep.subr.bf16.mxu0 0
    %676 = vmatpush1.bf16.msra.mxu0 %v584
    %677 = vmatprep.subr.bf16.mxu0 0
    %678 = vmatpush1.bf16.msra.mxu0 %v581
    %679 = vmatprep.subr.bf16.mxu0 0
    %680 = vmatpush1.bf16.msra.mxu0 %v578
    %681 = vmatprep.subr.bf16.mxu0 0
    %682 = vmatpush2.bf16.msra.mxu0 0
    %683 = vmatprep.subr.bf16.mxu0 0
    %684 = vmatpush2.bf16.msra.mxu0 0
    %685 = vmatprep.subr.bf16.mxu0 0
    %686 = vmatpush2.bf16.msra.mxu0 0
    %687 = vmatprep.subr.bf16.mxu0 0
    %688 = vmatpush2.bf16.msra.mxu0 0
    %689 = vmatprep.subr.bf16.mxu0 0
    %690 = vmatpush2.bf16.msra.mxu0 0
    %691 = vmatprep.subr.bf16.mxu0 0
    %692 = vmatpush2.bf16.msra.mxu0 0
    %693 = vmatprep.subr.bf16.mxu0 0
    %694 = vmatpush2.bf16.msra.mxu0 0
    %695 = vmatprep.subr.bf16.mxu0 0
    %696 = vmatpush2.bf16.msra.mxu0 0
    %697 = vmatprep.mubr.bf16.mxu0 0
    %698 = vmatmul.mubr.bf16.gmra.mxu0 %v495
    %v699 = vpop.f32.mrf.mxu0
    %v700 = vadd.f32 0.0, %v699
    %v701 = vpop.f32.mrf.mxu0
    %v702 = vpop.f32.mrf.mxu0
    %v703 = vpop.f32.mrf.mxu0
    %704 = vdwg.mxu0
    %v705 = vadd.f32 %v416, %v659
    %v706 = vadd.f32 %v418, %v661
    %v707 = vxor.u32 %v705, 2147483648
    %v708 = vxor.u32 %v706, 2147483648
    %v709 = vmul.f32 %v707, 1.442695
    %v710 = vpow.pop %v709
    %v711 = vmul.f32 %v708, 1.442695
    %v712 = vpow.pop %v711
    %v713 = vadd.f32 %v710, 1.0
    %v714 = vadd.f32 %v712, 1.0
    %v715 = vrcp.pop %v713
    %v716 = vmul.f32 1.0, %v715
    %v717 = vrcp.pop %v714
    %v718 = vmul.f32 1.0, %v717
    %v719 = vlaneseq
    %v720 = vshrl.u32 %v719, 7
    %v721 = vsub.s32 3, %v720
    %v722 = vrot.slane %v204, %v721
    %v724 = vadd.f32 %v700, %v722
    %v725 = vmul.f32 %v716, %v724
    %v726 = vadd.f32 %v457, %v725
    %v727 = vtanh.pop %v726
    %v728 = vsub.f32 1.0, %v718
    %v729 = vmul.f32 %v728, %v727
    %v730 = vmul.f32 %v718, %v494
    %v731 = vadd.f32 %v729, %v730
    %v732 = vpack.c.bf16 %v731, %v731
    %733 = vmatprep.subr.bf16.mxu0 %v598
    %734 = vmatpush1.bf16.msra.mxu0 %v597
    %735 = vmatprep.subr.bf16.mxu0 %v595
    %736 = vmatpush1.bf16.msra.mxu0 %v594
    %737 = vmatprep.subr.bf16.mxu0 %v592
    %738 = vmatpush1.bf16.msra.mxu0 %v591
    %739 = vmatprep.subr.bf16.mxu0 %v589
    %740 = vmatpush1.bf16.msra.mxu0 %v588
    %741 = vmatprep.subr.bf16.mxu0 %v586
    %742 = vmatpush1.bf16.msra.mxu0 %v585
    %743 = vmatprep.subr.bf16.mxu0 %v583
    %744 = vmatpush1.bf16.msra.mxu0 %v582
    %745 = vmatprep.subr.bf16.mxu0 %v580
    %746 = vmatpush1.bf16.msra.mxu0 %v579
    %747 = vmatprep.subr.bf16.mxu0 %v577
    %748 = vmatpush1.bf16.msra.mxu0 %v576
    %749 = vmatprep.subr.bf16.mxu0 0
    %750 = vmatpush2.bf16.msra.mxu0 0
    %751 = vmatprep.subr.bf16.mxu0 0
    %752 = vmatpush2.bf16.msra.mxu0 0
    %753 = vmatprep.subr.bf16.mxu0 0
    %754 = vmatpush2.bf16.msra.mxu0 0
    %755 = vmatprep.subr.bf16.mxu0 0
    %756 = vmatpush2.bf16.msra.mxu0 0
    %757 = vmatprep.subr.bf16.mxu0 0
    %758 = vmatpush2.bf16.msra.mxu0 0
    %759 = vmatprep.subr.bf16.mxu0 0
    %760 = vmatpush2.bf16.msra.mxu0 0
    %761 = vmatprep.subr.bf16.mxu0 0
    %762 = vmatpush2.bf16.msra.mxu0 0
    %763 = vmatprep.subr.bf16.mxu0 0
    %764 = vmatpush2.bf16.msra.mxu0 0
    %765 = vmatprep.mubr.bf16.mxu0 0
    %766 = vmatmul.mubr.bf16.gmra.mxu0 %v732
    %v767 = vpop.f32.mrf.mxu0
    %v768 = vadd.f32 0.0, %v767
    %v769 = vpop.f32.mrf.mxu0
    %v770 = vadd.f32 0.0, %v769
    %v771 = vpop.f32.mrf.mxu0
    %v772 = vpop.f32.mrf.mxu0
    %773 = vdwg.mxu0
    %774 = vmatprep.subr.bf16.mxu0 0
    %775 = vmatpush1.bf16.msra.mxu0 %v599
    %776 = vmatprep.subr.bf16.mxu0 0
    %777 = vmatpush1.bf16.msra.mxu0 %v596
    %778 = vmatprep.subr.bf16.mxu0 0
    %779 = vmatpush1.bf16.msra.mxu0 %v593
    %780 = vmatprep.subr.bf16.mxu0 0
    %781 = vmatpush1.bf16.msra.mxu0 %v590
    %782 = vmatprep.subr.bf16.mxu0 0
    %783 = vmatpush1.bf16.msra.mxu0 %v587
    %784 = vmatprep.subr.bf16.mxu0 0
    %785 = vmatpush1.bf16.msra.mxu0 %v584
    %786 = vmatprep.subr.bf16.mxu0 0
    %787 = vmatpush1.bf16.msra.mxu0 %v581
    %788 = vmatprep.subr.bf16.mxu0 0
    %789 = vmatpush1.bf16.msra.mxu0 %v578
    %790 = vmatprep.subr.bf16.mxu0 0
    %791 = vmatpush2.bf16.msra.mxu0 0
    %792 = vmatprep.subr.bf16.mxu0 0
    %793 = vmatpush2.bf16.msra.mxu0 0
    %794 = vmatprep.subr.bf16.mxu0 0
    %795 = vmatpush2.bf16.msra.mxu0 0
    %796 = vmatprep.subr.bf16.mxu0 0
    %797 = vmatpush2.bf16.msra.mxu0 0
    %798 = vmatprep.subr.bf16.mxu0 0
    %799 = vmatpush2.bf16.msra.mxu0 0
    %800 = vmatprep.subr.bf16.mxu0 0
    %801 = vmatpush2.bf16.msra.mxu0 0
    %802 = vmatprep.subr.bf16.mxu0 0
    %803 = vmatpush2.bf16.msra.mxu0 0
    %804 = vmatprep.subr.bf16.mxu0 0
    %805 = vmatpush2.bf16.msra.mxu0 0
    %806 = vmatprep.mubr.bf16.mxu0 0
    %807 = vmatmul.mubr.bf16.gmra.mxu0 %v732
    %v808 = vpop.f32.mrf.mxu0
    %v809 = vadd.f32 0.0, %v808
    %v810 = vpop.f32.mrf.mxu0
    %v811 = vpop.f32.mrf.mxu0
    %v812 = vpop.f32.mrf.mxu0
    %813 = vdwg.mxu0
    %v816 = vrot.slane %v768, 7
    %v817 = vrot.slane %v770, 7
    %v820 = vadd.f32 %v416, %v816
    %v821 = vadd.f32 %v418, %v817
    %v822 = vxor.u32 %v820, 2147483648
    %v823 = vxor.u32 %v821, 2147483648
    %v824 = vmul.f32 %v822, 1.442695
    %v825 = vpow.pop %v824
    %v826 = vmul.f32 %v823, 1.442695
    %v827 = vpow.pop %v826
    %v828 = vadd.f32 %v825, 1.0
    %v829 = vadd.f32 %v827, 1.0
    %v830 = vrcp.pop %v828
    %v831 = vmul.f32 1.0, %v830
    %v832 = vrcp.pop %v829
    %v833 = vmul.f32 1.0, %v832
    %v834 = vadd.f32 %v809, %v722
    %v836 = vrot.slane %v834, 7
    %v838 = vmul.f32 %v831, %v836
    %v839 = vadd.f32 %v457, %v838
    %v840 = vtanh.pop %v839
    %v841 = vsub.f32 1.0, %v833
    %v842 = vmul.f32 %v841, %v840
    %v844 = vrot.slane %v731, 7
    %v846 = vmul.f32 %v833, %v844
    %v847 = vadd.f32 %v842, %v846
    %v848 = vpack.c.bf16 %v847, %v847
    %v850 = vshrl.u32 %v848, 16
    %853 = vmatprep.subr.bf16.mxu0 %v598
    %854 = vmatpush1.bf16.msra.mxu0 %v597
    %855 = vmatprep.subr.bf16.mxu0 %v595
    %856 = vmatpush1.bf16.msra.mxu0 %v594
    %857 = vmatprep.subr.bf16.mxu0 %v592
    %858 = vmatpush1.bf16.msra.mxu0 %v591
    %859 = vmatprep.subr.bf16.mxu0 %v589
    %860 = vmatpush1.bf16.msra.mxu0 %v588
    %861 = vmatprep.subr.bf16.mxu0 %v586
    %862 = vmatpush1.bf16.msra.mxu0 %v585
    %863 = vmatprep.subr.bf16.mxu0 %v583
    %864 = vmatpush1.bf16.msra.mxu0 %v582
    %865 = vmatprep.subr.bf16.mxu0 %v580
    %866 = vmatpush1.bf16.msra.mxu0 %v579
    %867 = vmatprep.subr.bf16.mxu0 %v577
    %868 = vmatpush1.bf16.msra.mxu0 %v576
    %869 = vmatprep.subr.bf16.mxu0 0
    %870 = vmatpush2.bf16.msra.mxu0 0
    %871 = vmatprep.subr.bf16.mxu0 0
    %872 = vmatpush2.bf16.msra.mxu0 0
    %873 = vmatprep.subr.bf16.mxu0 0
    %874 = vmatpush2.bf16.msra.mxu0 0
    %875 = vmatprep.subr.bf16.mxu0 0
    %876 = vmatpush2.bf16.msra.mxu0 0
    %877 = vmatprep.subr.bf16.mxu0 0
    %878 = vmatpush2.bf16.msra.mxu0 0
    %879 = vmatprep.subr.bf16.mxu0 0
    %880 = vmatpush2.bf16.msra.mxu0 0
    %881 = vmatprep.subr.bf16.mxu0 0
    %882 = vmatpush2.bf16.msra.mxu0 0
    %883 = vmatprep.subr.bf16.mxu0 0
    %884 = vmatpush2.bf16.msra.mxu0 0
    %885 = vmatprep.mubr.bf16.mxu0 0
    %886 = vmatmul.mubr.bf16.gmra.mxu0 %v850
    %v887 = vpop.f32.mrf.mxu0
    %v888 = vadd.f32 0.0, %v887
    %v889 = vpop.f32.mrf.mxu0
    %v890 = vadd.f32 0.0, %v889
    %v891 = vpop.f32.mrf.mxu0
    %v892 = vpop.f32.mrf.mxu0
    %893 = vdwg.mxu0
    %894 = vmatprep.subr.bf16.mxu0 0
    %895 = vmatpush1.bf16.msra.mxu0 %v599
    %896 = vmatprep.subr.bf16.mxu0 0
    %897 = vmatpush1.bf16.msra.mxu0 %v596
    %898 = vmatprep.subr.bf16.mxu0 0
    %899 = vmatpush1.bf16.msra.mxu0 %v593
    %900 = vmatprep.subr.bf16.mxu0 0
    %901 = vmatpush1.bf16.msra.mxu0 %v590
    %902 = vmatprep.subr.bf16.mxu0 0
    %903 = vmatpush1.bf16.msra.mxu0 %v587
    %904 = vmatprep.subr.bf16.mxu0 0
    %905 = vmatpush1.bf16.msra.mxu0 %v584
    %906 = vmatprep.subr.bf16.mxu0 0
    %907 = vmatpush1.bf16.msra.mxu0 %v581
    %908 = vmatprep.subr.bf16.mxu0 0
    %909 = vmatpush1.bf16.msra.mxu0 %v578
    %910 = vmatprep.subr.bf16.mxu0 0
    %911 = vmatpush2.bf16.msra.mxu0 0
    %912 = vmatprep.subr.bf16.mxu0 0
    %913 = vmatpush2.bf16.msra.mxu0 0
    %914 = vmatprep.subr.bf16.mxu0 0
    %915 = vmatpush2.bf16.msra.mxu0 0
    %916 = vmatprep.subr.bf16.mxu0 0
    %917 = vmatpush2.bf16.msra.mxu0 0
    %918 = vmatprep.subr.bf16.mxu0 0
    %919 = vmatpush2.bf16.msra.mxu0 0
    %920 = vmatprep.subr.bf16.mxu0 0
    %921 = vmatpush2.bf16.msra.mxu0 0
    %922 = vmatprep.subr.bf16.mxu0 0
    %923 = vmatpush2.bf16.msra.mxu0 0
    %924 = vmatprep.subr.bf16.mxu0 0
    %925 = vmatpush2.bf16.msra.mxu0 0
    %926 = vmatprep.mubr.bf16.mxu0 0
    %927 = vmatmul.mubr.bf16.gmra.mxu0 %v850
    %v928 = vpop.f32.mrf.mxu0
    %v929 = vadd.f32 0.0, %v928
    %v930 = vpop.f32.mrf.mxu0
    %v931 = vpop.f32.mrf.mxu0
    %v932 = vpop.f32.mrf.mxu0
    %933 = vdwg.mxu0
    %v936 = vrot.slane %v888, 6
    %v937 = vrot.slane %v890, 6
    %v940 = vadd.f32 %v416, %v936
    %v941 = vadd.f32 %v418, %v937
    %v942 = vxor.u32 %v940, 2147483648
    %v943 = vxor.u32 %v941, 2147483648
    %v944 = vmul.f32 %v942, 1.442695
    %v945 = vpow.pop %v944
    %v946 = vmul.f32 %v943, 1.442695
    %v947 = vpow.pop %v946
    %v948 = vadd.f32 %v945, 1.0
    %v949 = vadd.f32 %v947, 1.0
    %v950 = vrcp.pop %v948
    %v951 = vmul.f32 1.0, %v950
    %v952 = vrcp.pop %v949
    %v953 = vmul.f32 1.0, %v952
    %v954 = vadd.f32 %v929, %v722
    %v956 = vrot.slane %v954, 6
    %v958 = vmul.f32 %v951, %v956
    %v959 = vadd.f32 %v457, %v958
    %v960 = vtanh.pop %v959
    %v961 = vsub.f32 1.0, %v953
    %v962 = vmul.f32 %v961, %v960
    %v964 = vrot.slane %v847, 7
    %v966 = vmul.f32 %v953, %v964
    %v967 = vadd.f32 %v962, %v966
    %v968 = vpack.c.bf16 %v967, %v967
    %v970 = vrot.slane %v968, 1
    %972 = vmatprep.subr.bf16.mxu0 %v598
    %973 = vmatpush1.bf16.msra.mxu0 %v597
    %974 = vmatprep.subr.bf16.mxu0 %v595
    %975 = vmatpush1.bf16.msra.mxu0 %v594
    %976 = vmatprep.subr.bf16.mxu0 %v592
    %977 = vmatpush1.bf16.msra.mxu0 %v591
    %978 = vmatprep.subr.bf16.mxu0 %v589
    %979 = vmatpush1.bf16.msra.mxu0 %v588
    %980 = vmatprep.subr.bf16.mxu0 %v586
    %981 = vmatpush1.bf16.msra.mxu0 %v585
    %982 = vmatprep.subr.bf16.mxu0 %v583
    %983 = vmatpush1.bf16.msra.mxu0 %v582
    %984 = vmatprep.subr.bf16.mxu0 %v580
    %985 = vmatpush1.bf16.msra.mxu0 %v579
    %986 = vmatprep.subr.bf16.mxu0 %v577
    %987 = vmatpush1.bf16.msra.mxu0 %v576
    %988 = vmatprep.subr.bf16.mxu0 0
    %989 = vmatpush2.bf16.msra.mxu0 0
    %990 = vmatprep.subr.bf16.mxu0 0
    %991 = vmatpush2.bf16.msra.mxu0 0
    %992 = vmatprep.subr.bf16.mxu0 0
    %993 = vmatpush2.bf16.msra.mxu0 0
    %994 = vmatprep.subr.bf16.mxu0 0
    %995 = vmatpush2.bf16.msra.mxu0 0
    %996 = vmatprep.subr.bf16.mxu0 0
    %997 = vmatpush2.bf16.msra.mxu0 0
    %998 = vmatprep.subr.bf16.mxu0 0
    %999 = vmatpush2.bf16.msra.mxu0 0
    %1000 = vmatprep.subr.bf16.mxu0 0
    %1001 = vmatpush2.bf16.msra.mxu0 0
    %1002 = vmatprep.subr.bf16.mxu0 0
    %1003 = vmatpush2.bf16.msra.mxu0 0
    %1004 = vmatprep.mubr.bf16.mxu0 0
    %1005 = vmatmul.mubr.bf16.gmra.mxu0 %v970
    %v1006 = vpop.f32.mrf.mxu0
    %v1007 = vadd.f32 0.0, %v1006
    %v1008 = vpop.f32.mrf.mxu0
    %v1009 = vadd.f32 0.0, %v1008
    %v1010 = vpop.f32.mrf.mxu0
    %v1011 = vpop.f32.mrf.mxu0
    %1012 = vdwg.mxu0
    %1013 = vmatprep.subr.bf16.mxu0 0
    %1014 = vmatpush1.bf16.msra.mxu0 %v599
    %1015 = vmatprep.subr.bf16.mxu0 0
    %1016 = vmatpush1.bf16.msra.mxu0 %v596
    %1017 = vmatprep.subr.bf16.mxu0 0
    %1018 = vmatpush1.bf16.msra.mxu0 %v593
    %1019 = vmatprep.subr.bf16.mxu0 0
    %1020 = vmatpush1.bf16.msra.mxu0 %v590
    %1021 = vmatprep.subr.bf16.mxu0 0
    %1022 = vmatpush1.bf16.msra.mxu0 %v587
    %1023 = vmatprep.subr.bf16.mxu0 0
    %1024 = vmatpush1.bf16.msra.mxu0 %v584
    %1025 = vmatprep.subr.bf16.mxu0 0
    %1026 = vmatpush1.bf16.msra.mxu0 %v581
    %1027 = vmatprep.subr.bf16.mxu0 0
    %1028 = vmatpush1.bf16.msra.mxu0 %v578
    %1029 = vmatprep.subr.bf16.mxu0 0
    %1030 = vmatpush2.bf16.msra.mxu0 0
    %1031 = vmatprep.subr.bf16.mxu0 0
    %1032 = vmatpush2.bf16.msra.mxu0 0
    %1033 = vmatprep.subr.bf16.mxu0 0
    %1034 = vmatpush2.bf16.msra.mxu0 0
    %1035 = vmatprep.subr.bf16.mxu0 0
    %1036 = vmatpush2.bf16.msra.mxu0 0
    %1037 = vmatprep.subr.bf16.mxu0 0
    %1038 = vmatpush2.bf16.msra.mxu0 0
    %1039 = vmatprep.subr.bf16.mxu0 0
    %1040 = vmatpush2.bf16.msra.mxu0 0
    %1041 = vmatprep.subr.bf16.mxu0 0
    %1042 = vmatpush2.bf16.msra.mxu0 0
    %1043 = vmatprep.subr.bf16.mxu0 0
    %1044 = vmatpush2.bf16.msra.mxu0 0
    %1045 = vmatprep.mubr.bf16.mxu0 0
    %1046 = vmatmul.mubr.bf16.gmra.mxu0 %v970
    %v1047 = vpop.f32.mrf.mxu0
    %v1048 = vadd.f32 0.0, %v1047
    %v1049 = vpop.f32.mrf.mxu0
    %v1050 = vpop.f32.mrf.mxu0
    %v1051 = vpop.f32.mrf.mxu0
    %1052 = vdwg.mxu0
    %v1055 = vrot.slane %v1007, 5
    %v1056 = vrot.slane %v1009, 5
    %v1059 = vadd.f32 %v416, %v1055
    %v1060 = vadd.f32 %v418, %v1056
    %v1061 = vxor.u32 %v1059, 2147483648
    %v1062 = vxor.u32 %v1060, 2147483648
    %v1063 = vmul.f32 %v1061, 1.442695
    %v1064 = vpow.pop %v1063
    %v1065 = vmul.f32 %v1062, 1.442695
    %v1066 = vpow.pop %v1065
    %v1067 = vadd.f32 %v1064, 1.0
    %v1068 = vadd.f32 %v1066, 1.0
    %v1069 = vrcp.pop %v1067
    %v1070 = vmul.f32 1.0, %v1069
    %v1071 = vrcp.pop %v1068
    %v1072 = vmul.f32 1.0, %v1071
    %v1073 = vadd.f32 %v1048, %v722
    %v1075 = vrot.slane %v1073, 5
    %v1077 = vmul.f32 %v1070, %v1075
    %v1078 = vadd.f32 %v457, %v1077
    %v1079 = vtanh.pop %v1078
    %v1080 = vsub.f32 1.0, %v1072
    %v1081 = vmul.f32 %v1080, %v1079
    %v1083 = vrot.slane %v967, 7
    %v1085 = vmul.f32 %v1072, %v1083
    %v1086 = vadd.f32 %v1081, %v1085
    %v1087 = vpack.c.bf16 %v1086, %v1086
    %v1089 = vshrl.u32 %v1087, 16
    %v1091 = vrot.slane %v1089, 1
    %1093 = vmatprep.subr.bf16.mxu0 %v598
    %1094 = vmatpush1.bf16.msra.mxu0 %v597
    %1095 = vmatprep.subr.bf16.mxu0 %v595
    %1096 = vmatpush1.bf16.msra.mxu0 %v594
    %1097 = vmatprep.subr.bf16.mxu0 %v592
    %1098 = vmatpush1.bf16.msra.mxu0 %v591
    %1099 = vmatprep.subr.bf16.mxu0 %v589
    %1100 = vmatpush1.bf16.msra.mxu0 %v588
    %1101 = vmatprep.subr.bf16.mxu0 %v586
    %1102 = vmatpush1.bf16.msra.mxu0 %v585
    %1103 = vmatprep.subr.bf16.mxu0 %v583
    %1104 = vmatpush1.bf16.msra.mxu0 %v582
    %1105 = vmatprep.subr.bf16.mxu0 %v580
    %1106 = vmatpush1.bf16.msra.mxu0 %v579
    %1107 = vmatprep.subr.bf16.mxu0 %v577
    %1108 = vmatpush1.bf16.msra.mxu0 %v576
    %1109 = vmatprep.subr.bf16.mxu0 0
    %1110 = vmatpush2.bf16.msra.mxu0 0
    %1111 = vmatprep.subr.bf16.mxu0 0
    %1112 = vmatpush2.bf16.msra.mxu0 0
    %1113 = vmatprep.subr.bf16.mxu0 0
    %1114 = vmatpush2.bf16.msra.mxu0 0
    %1115 = vmatprep.subr.bf16.mxu0 0
    %1116 = vmatpush2.bf16.msra.mxu0 0
    %1117 = vmatprep.subr.bf16.mxu0 0
    %1118 = vmatpush2.bf16.msra.mxu0 0
    %1119 = vmatprep.subr.bf16.mxu0 0
    %1120 = vmatpush2.bf16.msra.mxu0 0
    %1121 = vmatprep.subr.bf16.mxu0 0
    %1122 = vmatpush2.bf16.msra.mxu0 0
    %1123 = vmatprep.subr.bf16.mxu0 0
    %1124 = vmatpush2.bf16.msra.mxu0 0
    %1125 = vmatprep.mubr.bf16.mxu0 0
    %1126 = vmatmul.mubr.bf16.gmra.mxu0 %v1091
    %v1127 = vpop.f32.mrf.mxu0
    %v1128 = vadd.f32 0.0, %v1127
    %v1129 = vpop.f32.mrf.mxu0
    %v1130 = vadd.f32 0.0, %v1129
    %v1131 = vpop.f32.mrf.mxu0
    %v1132 = vpop.f32.mrf.mxu0
    %1133 = vdwg.mxu0
    %1134 = vmatprep.subr.bf16.mxu0 0
    %1135 = vmatpush1.bf16.msra.mxu0 %v599
    %1136 = vmatprep.subr.bf16.mxu0 0
    %1137 = vmatpush1.bf16.msra.mxu0 %v596
    %1138 = vmatprep.subr.bf16.mxu0 0
    %1139 = vmatpush1.bf16.msra.mxu0 %v593
    %1140 = vmatprep.subr.bf16.mxu0 0
    %1141 = vmatpush1.bf16.msra.mxu0 %v590
    %1142 = vmatprep.subr.bf16.mxu0 0
    %1143 = vmatpush1.bf16.msra.mxu0 %v587
    %1144 = vmatprep.subr.bf16.mxu0 0
    %1145 = vmatpush1.bf16.msra.mxu0 %v584
    %1146 = vmatprep.subr.bf16.mxu0 0
    %1147 = vmatpush1.bf16.msra.mxu0 %v581
    %1148 = vmatprep.subr.bf16.mxu0 0
    %1149 = vmatpush1.bf16.msra.mxu0 %v578
    %1150 = vmatprep.subr.bf16.mxu0 0
    %1151 = vmatpush2.bf16.msra.mxu0 0
    %1152 = vmatprep.subr.bf16.mxu0 0
    %1153 = vmatpush2.bf16.msra.mxu0 0
    %1154 = vmatprep.subr.bf16.mxu0 0
    %1155 = vmatpush2.bf16.msra.mxu0 0
    %1156 = vmatprep.subr.bf16.mxu0 0
    %1157 = vmatpush2.bf16.msra.mxu0 0
    %1158 = vmatprep.subr.bf16.mxu0 0
    %1159 = vmatpush2.bf16.msra.mxu0 0
    %1160 = vmatprep.subr.bf16.mxu0 0
    %1161 = vmatpush2.bf16.msra.mxu0 0
    %1162 = vmatprep.subr.bf16.mxu0 0
    %1163 = vmatpush2.bf16.msra.mxu0 0
    %1164 = vmatprep.subr.bf16.mxu0 0
    %1165 = vmatpush2.bf16.msra.mxu0 0
    %1166 = vmatprep.mubr.bf16.mxu0 0
    %1167 = vmatmul.mubr.bf16.gmra.mxu0 %v1091
    %v1168 = vpop.f32.mrf.mxu0
    %v1169 = vadd.f32 0.0, %v1168
    %v1170 = vpop.f32.mrf.mxu0
    %v1171 = vpop.f32.mrf.mxu0
    %v1172 = vpop.f32.mrf.mxu0
    %1173 = vdwg.mxu0
    %v1176 = vrot.slane %v1128, 4
    %v1177 = vrot.slane %v1130, 4
    %v1180 = vadd.f32 %v416, %v1176
    %v1181 = vadd.f32 %v418, %v1177
    %v1182 = vxor.u32 %v1180, 2147483648
    %v1183 = vxor.u32 %v1181, 2147483648
    %v1184 = vmul.f32 %v1182, 1.442695
    %v1185 = vpow.pop %v1184
    %v1186 = vmul.f32 %v1183, 1.442695
    %v1187 = vpow.pop %v1186
    %v1188 = vadd.f32 %v1185, 1.0
    %v1189 = vadd.f32 %v1187, 1.0
    %v1190 = vrcp.pop %v1188
    %v1191 = vmul.f32 1.0, %v1190
    %v1192 = vrcp.pop %v1189
    %v1193 = vmul.f32 1.0, %v1192
    %v1194 = vadd.f32 %v1169, %v722
    %v1196 = vrot.slane %v1194, 4
    %v1198 = vmul.f32 %v1191, %v1196
    %v1199 = vadd.f32 %v457, %v1198
    %v1200 = vtanh.pop %v1199
    %v1201 = vsub.f32 1.0, %v1193
    %v1202 = vmul.f32 %v1201, %v1200
    %v1204 = vrot.slane %v1086, 7
    %v1206 = vmul.f32 %v1193, %v1204
    %v1207 = vadd.f32 %v1202, %v1206
    %v1208 = vpack.c.bf16 %v1207, %v1207
    %v1210 = vrot.slane %v1208, 2
    %1212 = vmatprep.subr.bf16.mxu0 %v598
    %1213 = vmatpush1.bf16.msra.mxu0 %v597
    %1214 = vmatprep.subr.bf16.mxu0 %v595
    %1215 = vmatpush1.bf16.msra.mxu0 %v594
    %1216 = vmatprep.subr.bf16.mxu0 %v592
    %1217 = vmatpush1.bf16.msra.mxu0 %v591
    %1218 = vmatprep.subr.bf16.mxu0 %v589
    %1219 = vmatpush1.bf16.msra.mxu0 %v588
    %1220 = vmatprep.subr.bf16.mxu0 %v586
    %1221 = vmatpush1.bf16.msra.mxu0 %v585
    %1222 = vmatprep.subr.bf16.mxu0 %v583
    %1223 = vmatpush1.bf16.msra.mxu0 %v582
    %1224 = vmatprep.subr.bf16.mxu0 %v580
    %1225 = vmatpush1.bf16.msra.mxu0 %v579
    %1226 = vmatprep.subr.bf16.mxu0 %v577
    %1227 = vmatpush1.bf16.msra.mxu0 %v576
    %1228 = vmatprep.subr.bf16.mxu0 0
    %1229 = vmatpush2.bf16.msra.mxu0 0
    %1230 = vmatprep.subr.bf16.mxu0 0
    %1231 = vmatpush2.bf16.msra.mxu0 0
    %1232 = vmatprep.subr.bf16.mxu0 0
    %1233 = vmatpush2.bf16.msra.mxu0 0
    %1234 = vmatprep.subr.bf16.mxu0 0
    %1235 = vmatpush2.bf16.msra.mxu0 0
    %1236 = vmatprep.subr.bf16.mxu0 0
    %1237 = vmatpush2.bf16.msra.mxu0 0
    %1238 = vmatprep.subr.bf16.mxu0 0
    %1239 = vmatpush2.bf16.msra.mxu0 0
    %1240 = vmatprep.subr.bf16.mxu0 0
    %1241 = vmatpush2.bf16.msra.mxu0 0
    %1242 = vmatprep.subr.bf16.mxu0 0
    %1243 = vmatpush2.bf16.msra.mxu0 0
    %1244 = vmatprep.mubr.bf16.mxu0 0
    %1245 = vmatmul.mubr.bf16.gmra.mxu0 %v1210
    %v1246 = vpop.f32.mrf.mxu0
    %v1247 = vadd.f32 0.0, %v1246
    %v1248 = vpop.f32.mrf.mxu0
    %v1249 = vadd.f32 0.0, %v1248
    %v1250 = vpop.f32.mrf.mxu0
    %v1251 = vpop.f32.mrf.mxu0
    %1252 = vdwg.mxu0
    %1253 = vmatprep.subr.bf16.mxu0 0
    %1254 = vmatpush1.bf16.msra.mxu0 %v599
    %1255 = vmatprep.subr.bf16.mxu0 0
    %1256 = vmatpush1.bf16.msra.mxu0 %v596
    %1257 = vmatprep.subr.bf16.mxu0 0
    %1258 = vmatpush1.bf16.msra.mxu0 %v593
    %1259 = vmatprep.subr.bf16.mxu0 0
    %1260 = vmatpush1.bf16.msra.mxu0 %v590
    %1261 = vmatprep.subr.bf16.mxu0 0
    %1262 = vmatpush1.bf16.msra.mxu0 %v587
    %1263 = vmatprep.subr.bf16.mxu0 0
    %1264 = vmatpush1.bf16.msra.mxu0 %v584
    %1265 = vmatprep.subr.bf16.mxu0 0
    %1266 = vmatpush1.bf16.msra.mxu0 %v581
    %1267 = vmatprep.subr.bf16.mxu0 0
    %1268 = vmatpush1.bf16.msra.mxu0 %v578
    %1269 = vmatprep.subr.bf16.mxu0 0
    %1270 = vmatpush2.bf16.msra.mxu0 0
    %1271 = vmatprep.subr.bf16.mxu0 0
    %1272 = vmatpush2.bf16.msra.mxu0 0
    %1273 = vmatprep.subr.bf16.mxu0 0
    %1274 = vmatpush2.bf16.msra.mxu0 0
    %1275 = vmatprep.subr.bf16.mxu0 0
    %1276 = vmatpush2.bf16.msra.mxu0 0
    %1277 = vmatprep.subr.bf16.mxu0 0
    %1278 = vmatpush2.bf16.msra.mxu0 0
    %1279 = vmatprep.subr.bf16.mxu0 0
    %1280 = vmatpush2.bf16.msra.mxu0 0
    %1281 = vmatprep.subr.bf16.mxu0 0
    %1282 = vmatpush2.bf16.msra.mxu0 0
    %1283 = vmatprep.subr.bf16.mxu0 0
    %1284 = vmatpush2.bf16.msra.mxu0 0
    %1285 = vmatprep.mubr.bf16.mxu0 0
    %1286 = vmatmul.mubr.bf16.gmra.mxu0 %v1210
    %v1287 = vpop.f32.mrf.mxu0
    %v1288 = vadd.f32 0.0, %v1287
    %v1289 = vpop.f32.mrf.mxu0
    %v1290 = vpop.f32.mrf.mxu0
    %v1291 = vpop.f32.mrf.mxu0
    %1292 = vdwg.mxu0
    %v1295 = vrot.slane %v1247, 3
    %v1296 = vrot.slane %v1249, 3
    %v1299 = vadd.f32 %v416, %v1295
    %v1300 = vadd.f32 %v418, %v1296
    %v1301 = vxor.u32 %v1299, 2147483648
    %v1302 = vxor.u32 %v1300, 2147483648
    %v1303 = vmul.f32 %v1301, 1.442695
    %v1304 = vpow.pop %v1303
    %v1305 = vmul.f32 %v1302, 1.442695
    %v1306 = vpow.pop %v1305
    %v1307 = vadd.f32 %v1304, 1.0
    %v1308 = vadd.f32 %v1306, 1.0
    %v1309 = vrcp.pop %v1307
    %v1310 = vmul.f32 1.0, %v1309
    %v1311 = vrcp.pop %v1308
    %v1312 = vmul.f32 1.0, %v1311
    %v1313 = vadd.f32 %v1288, %v722
    %v1315 = vrot.slane %v1313, 3
    %v1317 = vmul.f32 %v1310, %v1315
    %v1318 = vadd.f32 %v457, %v1317
    %v1319 = vtanh.pop %v1318
    %v1320 = vsub.f32 1.0, %v1312
    %v1321 = vmul.f32 %v1320, %v1319
    %v1323 = vrot.slane %v1207, 7
    %v1325 = vmul.f32 %v1312, %v1323
    %v1326 = vadd.f32 %v1321, %v1325
    %v1327 = vpack.c.bf16 %v1326, %v1326
    %v1329 = vshrl.u32 %v1327, 16
    %v1331 = vrot.slane %v1329, 2
    %1333 = vmatprep.subr.bf16.mxu0 %v598
    %1334 = vmatpush1.bf16.msra.mxu0 %v597
    %1335 = vmatprep.subr.bf16.mxu0 %v595
    %1336 = vmatpush1.bf16.msra.mxu0 %v594
    %1337 = vmatprep.subr.bf16.mxu0 %v592
    %1338 = vmatpush1.bf16.msra.mxu0 %v591
    %1339 = vmatprep.subr.bf16.mxu0 %v589
    %1340 = vmatpush1.bf16.msra.mxu0 %v588
    %1341 = vmatprep.subr.bf16.mxu0 %v586
    %1342 = vmatpush1.bf16.msra.mxu0 %v585
    %1343 = vmatprep.subr.bf16.mxu0 %v583
    %1344 = vmatpush1.bf16.msra.mxu0 %v582
    %1345 = vmatprep.subr.bf16.mxu0 %v580
    %1346 = vmatpush1.bf16.msra.mxu0 %v579
    %1347 = vmatprep.subr.bf16.mxu0 %v577
    %1348 = vmatpush1.bf16.msra.mxu0 %v576
    %1349 = vmatprep.subr.bf16.mxu0 0
    %1350 = vmatpush2.bf16.msra.mxu0 0
    %1351 = vmatprep.subr.bf16.mxu0 0
    %1352 = vmatpush2.bf16.msra.mxu0 0
    %1353 = vmatprep.subr.bf16.mxu0 0
    %1354 = vmatpush2.bf16.msra.mxu0 0
    %1355 = vmatprep.subr.bf16.mxu0 0
    %1356 = vmatpush2.bf16.msra.mxu0 0
    %1357 = vmatprep.subr.bf16.mxu0 0
    %1358 = vmatpush2.bf16.msra.mxu0 0
    %1359 = vmatprep.subr.bf16.mxu0 0
    %1360 = vmatpush2.bf16.msra.mxu0 0
    %1361 = vmatprep.subr.bf16.mxu0 0
    %1362 = vmatpush2.bf16.msra.mxu0 0
    %1363 = vmatprep.subr.bf16.mxu0 0
    %1364 = vmatpush2.bf16.msra.mxu0 0
    %1365 = vmatprep.mubr.bf16.mxu0 0
    %1366 = vmatmul.mubr.bf16.gmra.mxu0 %v1331
    %v1367 = vpop.f32.mrf.mxu0
    %v1368 = vadd.f32 0.0, %v1367
    %v1369 = vpop.f32.mrf.mxu0
    %v1370 = vadd.f32 0.0, %v1369
    %v1371 = vpop.f32.mrf.mxu0
    %v1372 = vpop.f32.mrf.mxu0
    %1373 = vdwg.mxu0
    %1374 = vmatprep.subr.bf16.mxu0 0
    %1375 = vmatpush1.bf16.msra.mxu0 %v599
    %1376 = vmatprep.subr.bf16.mxu0 0
    %1377 = vmatpush1.bf16.msra.mxu0 %v596
    %1378 = vmatprep.subr.bf16.mxu0 0
    %1379 = vmatpush1.bf16.msra.mxu0 %v593
    %1380 = vmatprep.subr.bf16.mxu0 0
    %1381 = vmatpush1.bf16.msra.mxu0 %v590
    %1382 = vmatprep.subr.bf16.mxu0 0
    %1383 = vmatpush1.bf16.msra.mxu0 %v587
    %1384 = vmatprep.subr.bf16.mxu0 0
    %1385 = vmatpush1.bf16.msra.mxu0 %v584
    %1386 = vmatprep.subr.bf16.mxu0 0
    %1387 = vmatpush1.bf16.msra.mxu0 %v581
    %1388 = vmatprep.subr.bf16.mxu0 0
    %1389 = vmatpush1.bf16.msra.mxu0 %v578
    %1390 = vmatprep.subr.bf16.mxu0 0
    %1391 = vmatpush2.bf16.msra.mxu0 0
    %1392 = vmatprep.subr.bf16.mxu0 0
    %1393 = vmatpush2.bf16.msra.mxu0 0
    %1394 = vmatprep.subr.bf16.mxu0 0
    %1395 = vmatpush2.bf16.msra.mxu0 0
    %1396 = vmatprep.subr.bf16.mxu0 0
    %1397 = vmatpush2.bf16.msra.mxu0 0
    %1398 = vmatprep.subr.bf16.mxu0 0
    %1399 = vmatpush2.bf16.msra.mxu0 0
    %1400 = vmatprep.subr.bf16.mxu0 0
    %1401 = vmatpush2.bf16.msra.mxu0 0
    %1402 = vmatprep.subr.bf16.mxu0 0
    %1403 = vmatpush2.bf16.msra.mxu0 0
    %1404 = vmatprep.subr.bf16.mxu0 0
    %1405 = vmatpush2.bf16.msra.mxu0 0
    %1406 = vmatprep.mubr.bf16.mxu0 0
    %1407 = vmatmul.mubr.bf16.gmra.mxu0 %v1331
    %v1408 = vpop.f32.mrf.mxu0
    %v1409 = vadd.f32 0.0, %v1408
    %v1410 = vpop.f32.mrf.mxu0
    %v1411 = vpop.f32.mrf.mxu0
    %v1412 = vpop.f32.mrf.mxu0
    %1413 = vdwg.mxu0
    %v1416 = vrot.slane %v1368, 2
    %v1417 = vrot.slane %v1370, 2
    %v1420 = vadd.f32 %v416, %v1416
    %v1421 = vadd.f32 %v418, %v1417
    %v1422 = vxor.u32 %v1420, 2147483648
    %v1423 = vxor.u32 %v1421, 2147483648
    %v1424 = vmul.f32 %v1422, 1.442695
    %v1425 = vpow.pop %v1424
    %v1426 = vmul.f32 %v1423, 1.442695
    %v1427 = vpow.pop %v1426
    %v1428 = vadd.f32 %v1425, 1.0
    %v1429 = vadd.f32 %v1427, 1.0
    %v1430 = vrcp.pop %v1428
    %v1431 = vmul.f32 1.0, %v1430
    %v1432 = vrcp.pop %v1429
    %v1433 = vmul.f32 1.0, %v1432
    %v1434 = vadd.f32 %v1409, %v722
    %v1436 = vrot.slane %v1434, 2
    %v1438 = vmul.f32 %v1431, %v1436
    %v1439 = vadd.f32 %v457, %v1438
    %v1440 = vtanh.pop %v1439
    %v1441 = vsub.f32 1.0, %v1433
    %v1442 = vmul.f32 %v1441, %v1440
    %v1444 = vrot.slane %v1326, 7
    %v1446 = vmul.f32 %v1433, %v1444
    %v1447 = vadd.f32 %v1442, %v1446
    %v1448 = vpack.c.bf16 %v1447, %v1447
    %v1450 = vrot.slane %v1448, 3
    %1452 = vmatprep.subr.bf16.mxu0 %v598
    %1453 = vmatpush1.bf16.msra.mxu0 %v597
    %1454 = vmatprep.subr.bf16.mxu0 %v595
    %1455 = vmatpush1.bf16.msra.mxu0 %v594
    %1456 = vmatprep.subr.bf16.mxu0 %v592
    %1457 = vmatpush1.bf16.msra.mxu0 %v591
    %1458 = vmatprep.subr.bf16.mxu0 %v589
    %1459 = vmatpush1.bf16.msra.mxu0 %v588
    %1460 = vmatprep.subr.bf16.mxu0 %v586
    %1461 = vmatpush1.bf16.msra.mxu0 %v585
    %1462 = vmatprep.subr.bf16.mxu0 %v583
    %1463 = vmatpush1.bf16.msra.mxu0 %v582
    %1464 = vmatprep.subr.bf16.mxu0 %v580
    %1465 = vmatpush1.bf16.msra.mxu0 %v579
    %1466 = vmatprep.subr.bf16.mxu0 %v577
    %1467 = vmatpush1.bf16.msra.mxu0 %v576
    %1468 = vmatprep.subr.bf16.mxu0 0
    %1469 = vmatpush2.bf16.msra.mxu0 0
    %1470 = vmatprep.subr.bf16.mxu0 0
    %1471 = vmatpush2.bf16.msra.mxu0 0
    %1472 = vmatprep.subr.bf16.mxu0 0
    %1473 = vmatpush2.bf16.msra.mxu0 0
    %1474 = vmatprep.subr.bf16.mxu0 0
    %1475 = vmatpush2.bf16.msra.mxu0 0
    %1476 = vmatprep.subr.bf16.mxu0 0
    %1477 = vmatpush2.bf16.msra.mxu0 0
    %1478 = vmatprep.subr.bf16.mxu0 0
    %1479 = vmatpush2.bf16.msra.mxu0 0
    %1480 = vmatprep.subr.bf16.mxu0 0
    %1481 = vmatpush2.bf16.msra.mxu0 0
    %1482 = vmatprep.subr.bf16.mxu0 0
    %1483 = vmatpush2.bf16.msra.mxu0 0
    %1484 = vmatprep.mubr.bf16.mxu0 0
    %1485 = vmatmul.mubr.bf16.gmra.mxu0 %v1450
    %v1486 = vpop.f32.mrf.mxu0
    %v1487 = vadd.f32 0.0, %v1486
    %v1488 = vpop.f32.mrf.mxu0
    %v1489 = vadd.f32 0.0, %v1488
    %v1490 = vpop.f32.mrf.mxu0
    %v1491 = vpop.f32.mrf.mxu0
    %1492 = vdwg.mxu0
    %1493 = vmatprep.subr.bf16.mxu0 0
    %1494 = vmatpush1.bf16.msra.mxu0 %v599
    %1495 = vmatprep.subr.bf16.mxu0 0
    %1496 = vmatpush1.bf16.msra.mxu0 %v596
    %1497 = vmatprep.subr.bf16.mxu0 0
    %1498 = vmatpush1.bf16.msra.mxu0 %v593
    %1499 = vmatprep.subr.bf16.mxu0 0
    %1500 = vmatpush1.bf16.msra.mxu0 %v590
    %1501 = vmatprep.subr.bf16.mxu0 0
    %1502 = vmatpush1.bf16.msra.mxu0 %v587
    %1503 = vmatprep.subr.bf16.mxu0 0
    %1504 = vmatpush1.bf16.msra.mxu0 %v584
    %1505 = vmatprep.subr.bf16.mxu0 0
    %1506 = vmatpush1.bf16.msra.mxu0 %v581
    %1507 = vmatprep.subr.bf16.mxu0 0
    %1508 = vmatpush1.bf16.msra.mxu0 %v578
    %1509 = vmatprep.subr.bf16.mxu0 0
    %1510 = vmatpush2.bf16.msra.mxu0 0
    %1511 = vmatprep.subr.bf16.mxu0 0
    %1512 = vmatpush2.bf16.msra.mxu0 0
    %1513 = vmatprep.subr.bf16.mxu0 0
    %1514 = vmatpush2.bf16.msra.mxu0 0
    %1515 = vmatprep.subr.bf16.mxu0 0
    %1516 = vmatpush2.bf16.msra.mxu0 0
    %1517 = vmatprep.subr.bf16.mxu0 0
    %1518 = vmatpush2.bf16.msra.mxu0 0
    %1519 = vmatprep.subr.bf16.mxu0 0
    %1520 = vmatpush2.bf16.msra.mxu0 0
    %1521 = vmatprep.subr.bf16.mxu0 0
    %1522 = vmatpush2.bf16.msra.mxu0 0
    %1523 = vmatprep.subr.bf16.mxu0 0
    %1524 = vmatpush2.bf16.msra.mxu0 0
    %1525 = vmatprep.mubr.bf16.mxu0 0
    %1526 = vmatmul.mubr.bf16.gmra.mxu0 %v1450
    %v1527 = vpop.f32.mrf.mxu0
    %v1528 = vadd.f32 0.0, %v1527
    %v1529 = vpop.f32.mrf.mxu0
    %v1530 = vpop.f32.mrf.mxu0
    %v1531 = vpop.f32.mrf.mxu0
    %1532 = vdwg.mxu0
    %v1535 = vrot.slane %v1487, 1
    %v1536 = vrot.slane %v1489, 1
    %v1539 = vadd.f32 %v416, %v1535
    %v1540 = vadd.f32 %v418, %v1536
    %v1541 = vxor.u32 %v1539, 2147483648
    %v1542 = vxor.u32 %v1540, 2147483648
    %v1543 = vmul.f32 %v1541, 1.442695
    %v1544 = vpow.pop %v1543
    %v1545 = vmul.f32 %v1542, 1.442695
    %v1546 = vpow.pop %v1545
    %v1547 = vadd.f32 %v1544, 1.0
    %v1548 = vadd.f32 %v1546, 1.0
    %v1549 = vrcp.pop %v1547
    %v1550 = vmul.f32 1.0, %v1549
    %v1551 = vrcp.pop %v1548
    %v1552 = vmul.f32 1.0, %v1551
    %v1553 = vadd.f32 %v1528, %v722
    %v1555 = vrot.slane %v1553, 1
    %v1557 = vmul.f32 %v1550, %v1555
    %v1558 = vadd.f32 %v457, %v1557
    %v1559 = vtanh.pop %v1558
    %v1560 = vsub.f32 1.0, %v1552
    %v1561 = vmul.f32 %v1560, %v1559
    %v1563 = vrot.slane %v1447, 7
    %v1565 = vmul.f32 %v1552, %v1563
    %v1566 = vadd.f32 %v1561, %v1565
    %vm1567 = vcmask 1040384
    %v1568 = vsel %vm1567, %v731, %v847
    %vm1569 = vcmask 1041408
    %v1570 = vsel %vm1569, %v1568, %v967
    %vm1571 = vcmask 1042432
    %v1572 = vsel %vm1571, %v1570, %v1086
    %vm1573 = vcmask 1043456
    %v1574 = vsel %vm1573, %v1572, %v1207
    %vm1575 = vcmask 1044480
    %v1576 = vsel %vm1575, %v1574, %v1326
    %vm1577 = vcmask 1045504
    %v1578 = vsel %vm1577, %v1576, %v1447
    %vm1579 = vcmask 1046528
    %v1580 = vsel %vm1579, %v1578, %v1566
    %v1581 = vpack.c.bf16 %v1580, %v1580
    %v1582 = vld [vmem:[#allocation8] sm:$0xf]
    %v1583 = vld [vmem:[#allocation8 + $0x4] sm:$0xf]
    %v1584 = vld [vmem:[#allocation8 + $0x8] sm:$0xf]
    %v1585 = vld [vmem:[#allocation8 + $0xc] sm:$0xf]
    %v1586 = vld [vmem:[#allocation8 + $0x10] sm:$0xf]
    %v1587 = vld [vmem:[#allocation8 + $0x14] sm:$0xf]
    %v1588 = vld [vmem:[#allocation8 + $0x18] sm:$0xf]
    %v1589 = vld [vmem:[#allocation8 + $0x1c] sm:$0xf]
    %v1590 = vld [vmem:[#allocation8 + $0x20] sm:$0xf]
    %v1591 = vld [vmem:[#allocation8 + $0x24] sm:$0xf]
    %v1592 = vld [vmem:[#allocation8 + $0x28] sm:$0xf]
    %v1593 = vld [vmem:[#allocation8 + $0x2c] sm:$0xf]
    %v1594 = vld [vmem:[#allocation8 + $0x30] sm:$0xf]
    %v1595 = vld [vmem:[#allocation8 + $0x34] sm:$0xf]
    %v1596 = vld [vmem:[#allocation8 + $0x38] sm:$0xf]
    %v1597 = vld [vmem:[#allocation8 + $0x3c] sm:$0xf]
    %v1598 = vld [vmem:[%s7] sm:$0x1]
    %v1600 = vlaneseq
    %v1601 = vshrl.u32 %v1600, 7
    %v1602 = vsub.s32 0, %v1601
    %v1603 = vrot.slane %v1598, %v1602
    %v1621 = vunpack.c.l.b16 %v1582
    %v1622 = vunpack.c.l.b16 %v1583
    %v1623 = vunpack.c.l.b16 %v1584
    %v1624 = vunpack.c.l.b16 %v1585
    %v1625 = vunpack.c.l.b16 %v1586
    %v1626 = vunpack.c.l.b16 %v1587
    %v1627 = vunpack.c.l.b16 %v1588
    %v1628 = vunpack.c.l.b16 %v1589
    %v1629 = vunpack.c.l.b16 %v1590
    %v1630 = vunpack.c.l.b16 %v1591
    %v1631 = vunpack.c.l.b16 %v1592
    %v1632 = vunpack.c.l.b16 %v1593
    %v1633 = vunpack.c.l.b16 %v1594
    %v1634 = vunpack.c.l.b16 %v1595
    %v1635 = vunpack.c.l.b16 %v1596
    %v1636 = vunpack.c.l.b16 %v1597
    %v1637 = vpack.c.b16 %v1622, %v1621
    %v1638 = vpack.c.b16 %v1624, %v1623
    %v1639 = vpack.c.b16 %v1626, %v1625
    %v1640 = vpack.c.b16 %v1628, %v1627
    %v1641 = vpack.c.b16 %v1630, %v1629
    %v1642 = vpack.c.b16 %v1632, %v1631
    %v1643 = vpack.c.b16 %v1634, %v1633
    %v1644 = vpack.c.b16 %v1636, %v1635
    %1653 = vmatprep.subr.bf16.mxu0 0
    %1654 = vmatpush1.bf16.msra.mxu0 %v1644
    %1655 = vmatprep.subr.bf16.mxu0 0
    %1656 = vmatpush1.bf16.msra.mxu0 %v1643
    %1657 = vmatprep.subr.bf16.mxu0 0
    %1658 = vmatpush1.bf16.msra.mxu0 %v1642
    %1659 = vmatprep.subr.bf16.mxu0 0
    %1660 = vmatpush1.bf16.msra.mxu0 %v1641
    %1661 = vmatprep.subr.bf16.mxu0 0
    %1662 = vmatpush1.bf16.msra.mxu0 %v1640
    %1663 = vmatprep.subr.bf16.mxu0 0
    %1664 = vmatpush1.bf16.msra.mxu0 %v1639
    %1665 = vmatprep.subr.bf16.mxu0 0
    %1666 = vmatpush1.bf16.msra.mxu0 %v1638
    %1667 = vmatprep.subr.bf16.mxu0 0
    %1668 = vmatpush1.bf16.msra.mxu0 %v1637
    %1669 = vmatprep.subr.bf16.mxu0 0
    %1670 = vmatpush2.bf16.msra.mxu0 0
    %1671 = vmatprep.subr.bf16.mxu0 0
    %1672 = vmatpush2.bf16.msra.mxu0 0
    %1673 = vmatprep.subr.bf16.mxu0 0
    %1674 = vmatpush2.bf16.msra.mxu0 0
    %1675 = vmatprep.subr.bf16.mxu0 0
    %1676 = vmatpush2.bf16.msra.mxu0 0
    %1677 = vmatprep.subr.bf16.mxu0 0
    %1678 = vmatpush2.bf16.msra.mxu0 0
    %1679 = vmatprep.subr.bf16.mxu0 0
    %1680 = vmatpush2.bf16.msra.mxu0 0
    %1681 = vmatprep.subr.bf16.mxu0 0
    %1682 = vmatpush2.bf16.msra.mxu0 0
    %1683 = vmatprep.subr.bf16.mxu0 0
    %1684 = vmatpush2.bf16.msra.mxu0 0
    %1685 = vmatprep.mubr.bf16.mxu0 0
    %1686 = vmatmul.mubr.bf16.gmra.mxu0 %v1581
    %v1687 = vpop.f32.mrf.mxu0
    %v1688 = vadd.f32 %v1603, %v1687
    %v1689 = vpop.f32.mrf.mxu0
    %v1690 = vpop.f32.mrf.mxu0
    %v1691 = vpop.f32.mrf.mxu0
    %1692 = vdwg.mxu0
    %vm1693 = vcmp.lt.s32.totalorder %v91, 64
    %v1694 = vsel %vm1693, %v1688, -1e+30
    %1695 = vmax.xlane.f32.xlu0 %v1694
    %v1696 = vpop.xlane.xlu0 %1695
    %v1697 = vsub.f32 %v1694, %v1696
    %v1698 = vmul.f32 %v1697, 1.442695
    %v1699 = vpow.pop %v1698
    %1700 = vadd.xlane.f32.xlu0 %v1699
    %v1701 = vpop.xlane.xlu0 %1700
    %v1702 = vlog2.pop %v1701
    %v1703 = vmul.f32 %v1702, 0.6931472
    %v1704 = vsub.f32 %v1697, %v1703
    %1705 = vst [vmem:[#allocation10] sm:$0xff] %v1704
    %1706 = vst [vmem:[#allocation11 - $0x7] sm:$0x80] %v1566
    // Predicated region
    $region50: #{tpu_custom_call.1} parent=1 // pred_check
      _
    $region51: #{tpu_custom_call.1} parent=1 // pred_check_branch
      %1708 = sbr.rel (0) target = $region53
    $region52: #{tpu_custom_call.1} parent=1 // pred_region
      %s1710 = ssub.s32 128, 128
      %1711 = vsyncadd [#allocation4], %s1710
      %s1713 = sshll.u32 [#allocation10], 4
      %s1714 = int_to_ptr.vmem [resolvable:$true] %s1713
      %1716 = dma.vmem_to_hbm [thread:$0]  %s1714, 128, %s8, [#allocation4]
    $region53: #{tpu_custom_call.1} parent=1 // pred_fallthru
      _
    // Predicated region
    $region54: #{tpu_custom_call.1} parent=1 // pred_check
      _
    $region55: #{tpu_custom_call.1} parent=1 // pred_check_branch
      %1718 = sbr.rel (0) target = $region57
    $region56: #{tpu_custom_call.1} parent=1 // pred_region
      %s1720 = ssub.s32 16, 16
      %1721 = vsyncadd [#allocation12], %s1720
      %s1723 = sshll.u32 [#allocation11], 4
      %s1724 = int_to_ptr.vmem [resolvable:$true] %s1723
      %1726 = dma.vmem_to_hbm [thread:$0]  %s1724, 16, %s9, [#allocation12]
    $region57: #{tpu_custom_call.1} parent=1 // pred_fallthru
      _
    // Predicated region
    $region58: #{tpu_custom_call.1} parent=1 // pred_check
      _
    $region59: #{tpu_custom_call.1} parent=1 // pred_check_branch
      %1728 = sbr.rel (0) target = $region61
    $region60: #{tpu_custom_call.1} parent=1 // pred_region
      %1729 = dma.done [#allocation4], 128
    $region61: #{tpu_custom_call.1} parent=1 // pred_fallthru
      _
    // Predicated region
    $region62: #{tpu_custom_call.1} parent=1 // pred_check
      _
    $region63: #{tpu_custom_call.1} parent=1 // pred_check_branch
      %1731 = sbr.rel (0) target = $region65
    $region64: #{tpu_custom_call.1} parent=1 // pred_region
      %1732 = dma.done [#allocation12], 16
    $region65: #{tpu_custom_call.1} parent=1 // pred_fallthru
      _
    %1733 = vsyncpa [#allocation3], 1
    %1734 = vsyncpa [#allocation6], 1
    %1735 = vsyncpa [#allocation9], 1
    %1736 = vsyncpa [#allocation4], 1
    %1737 = vsyncpa [#allocation12], 1

</llo_original>
